<compile_context>
chip_gen: v6e
topology: v6e:2x2x1
jax: 0.10.0
libtpu: 0.0.40
codegen_flags: <defaults>
</compile_context>

<pallas_src>
import math

import jax
import jax.numpy as jnp
from jax import lax
from jax.experimental import pallas as pl
from jax.experimental.pallas import tpu as pltpu


def _round_up(x, m):
    return ((x + m - 1) // m) * m


# distinct tap offsets of the fused 3-dilation stencil, grouped by horizontal
# shift dx -> tuple of vertical shifts dy (25 taps total, centre shared)
_TAPS_BY_DX = {
    0:  (-3, -2, -1, 0, 1, 2, 3),
    -1: (-1, 0, 1),  1: (-1, 0, 1),
    -2: (-2, 0, 2),  2: (-2, 0, 2),
    -3: (-3, 0, 3),  3: (-3, 0, 3),
}


def _make_kernel(prop_time, H, W, use_sparse, padr, padc, r_total, c_total):
    def kernel(*refs):
        if use_sparse:
            g1_ref, g2_ref, g3_ref, fuse_ref, x_ref, sp_ref, o_ref, pad_ref = refs
        else:
            g1_ref, g2_ref, g3_ref, fuse_ref, x_ref, o_ref, pad_ref = refs

        # ----- one-time per-block prep (hoisted out of the propagation loop) --
        fuse = fuse_ref[0].astype(jnp.float32)                     # (3, H, W)

        def _weights(g_ref, f):
            g = g_ref[0].astype(jnp.float32)                       # (9, H, W)
            e = jnp.exp(g - jnp.max(g, axis=0, keepdims=True))
            # softmax normaliser folded into the fusion weight:
            w = f * (1.0 / jnp.sum(e, axis=0))                     # (H, W)
            return e, w

        e1, w1 = _weights(g1_ref, fuse[0])
        e2, w2 = _weights(g2_ref, fuse[1])
        e3, w3 = _weights(g3_ref, fuse[2])

        # fold softmax + fusion into ONE weight plane per distinct tap offset.
        wtap = {}
        for d, e, w in ((1, e1, w1), (2, e2, w2), (3, e3, w3)):
            for ky in range(3):
                for kx in range(3):
                    key = ((ky - 1) * d, (kx - 1) * d)
                    plane = e[ky * 3 + kx] * w
                    wtap[key] = plane if key not in wtap else wtap[key] + plane

        x0 = x_ref[0, 0].astype(jnp.float32)                       # (H, W)

        if use_sparse:
            # sign() matches the PyTorch module exactly (negative sparse values
            # flip the blend, zeros keep the propagated value).
            mask = jnp.sign(sp_ref[0, 0].astype(jnp.float32))
            inv_mask = 1.0 - mask

        # zero the padded scratch once; the border is never written again.
        pad_ref[...] = jnp.zeros((r_total, c_total), jnp.float32)

        def prop_step(x):
            # aligned interior store (row offset 8, lane offset 128)
            pad_ref[padr:padr + H, padc:padc + W] = x

            acc = None
            # 7 horizontally shifted planes (1 aligned + 6 lane-shifted loads);
            # every tap below is a sublane-only slice of its plane.
            for dx, dys in _TAPS_BY_DX.items():
                plane = pad_ref[:, padc + dx:padc + dx + W]        # (r_total, W)
                for dy in dys:
                    tap = plane[padr + dy:padr + dy + H, :]
                    term = wtap[(dy, dx)] * tap
                    acc = term if acc is None else acc + term

            if use_sparse:
                acc = mask * x0 + inv_mask * acc
            return acc

        x = x0
        if prop_time <= 4:
            for _ in range(prop_time):          # unrolled: LLO sees everything
                x = prop_step(x)
        else:
            # long chains: bound live ranges instead of unrolling
            x = lax.fori_loop(0, prop_time, lambda _, xc: prop_step(xc), x)

        o_ref[0, 0] = x.astype(o_ref.dtype)

    return kernel


def affinity_propagate1(guided1, guided2, guided3, fuse, x,
                        sparse_depth=None, prop_time=2):
    B, C, H, W = guided1.shape
    K = int(math.sqrt(C))
    assert K * K == C and K == 3, "guided maps must have K^2 = 9 channels"
    use_sparse = sparse_depth is not None

    # (8,128)-aligned padded scratch: interior at row offset 8 / lane offset 128
    PADR, PADC = 8, 128
    R_TOTAL = PADR + _round_up(H + 3, 8)
    C_TOTAL = PADC + _round_up(W + 3, 128)

    kernel = _make_kernel(prop_time, H, W, use_sparse,
                          PADR, PADC, R_TOTAL, C_TOTAL)

    inputs = [guided1, guided2, guided3, fuse, x]
    in_specs = [
        pl.BlockSpec((1, 9, H, W), lambda b: (b, 0, 0, 0)),
        pl.BlockSpec((1, 9, H, W), lambda b: (b, 0, 0, 0)),
        pl.BlockSpec((1, 9, H, W), lambda b: (b, 0, 0, 0)),
        pl.BlockSpec((1, 3, H, W), lambda b: (b, 0, 0, 0)),
        pl.BlockSpec((1, 1, H, W), lambda b: (b, 0, 0, 0)),
    ]
    if use_sparse:
        inputs.append(sparse_depth)
        in_specs.append(pl.BlockSpec((1, 1, H, W), lambda b: (b, 0, 0, 0)))

    # Scoped-VMEM budget: double-buffered in/out blocks + padded scratch +
    # headroom for the weight planes, capped so it is valid on v7x (64 MiB).
    n_planes = 9 * 3 + 3 + 1 + (1 if use_sparse else 0) + 1   # inputs + output
    block_bytes = n_planes * H * W * 4
    scratch_bytes = R_TOTAL * C_TOTAL * 4
    vmem_limit = int(min(64 * 1024 * 1024,
                         2 * block_bytes + scratch_bytes + 16 * 1024 * 1024))

    return pl.pallas_call(
        kernel,
        out_shape=jax.ShapeDtypeStruct((B, 1, H, W), x.dtype),
        grid_spec=pltpu.PrefetchScalarGridSpec(
            num_scalar_prefetch=0,
            grid=(B,),
            in_specs=in_specs,
            out_specs=pl.BlockSpec((1, 1, H, W), lambda b: (b, 0, 0, 0)),
            scratch_shapes=[pltpu.VMEM((R_TOTAL, C_TOTAL), jnp.float32)],
        ),
        compiler_params=pltpu.CompilerParams(
            dimension_semantics=("parallel",),
            vmem_limit_bytes=vmem_limit),
    )(*inputs)


def _reference(guided1, guided2, guided3, fuse, x, prop_time, sparse_depth=None):
    """Pure-JAX reference mirroring the PyTorch forward (unfold + einsum)."""
    g1 = jax.nn.softmax(guided1, axis=1)
    g2 = jax.nn.softmax(guided2, axis=1)
    g3 = jax.nn.softmax(guided3, axis=1)
    B, _, H, W = guided1.shape
    if sparse_depth is not None:
        mask = jnp.sign(sparse_depth)
        x0 = x
    for _ in range(prop_time):
        pad = jnp.pad(x, ((0, 0), (0, 0), (3, 3), (3, 3)))
        outs = []
        for d, g in ((1, g1), (2, g2), (3, g3)):
            acc = jnp.zeros((B, 1, H, W), jnp.float32)
            for ky in range(3):
                for kx in range(3):
                    dy = (ky - 1) * d
                    dx = (kx - 1) * d
                    acc = acc + g[:, ky * 3 + kx:ky * 3 + kx + 1] * \
                        pad[:, :, 3 + dy:3 + dy + H, 3 + dx:3 + dx + W]
            outs.append(acc)
        x = outs[0] * fuse[:, 0:1] + outs[1] * fuse[:, 1:2] + outs[2] * fuse[:, 2:3]
        if sparse_depth is not None:
            x = mask * x0 + (1 - mask) * x
    return x


if __name__ == "__main__":
    B, H, W = 2, 16, 16
    prop_time = 2

    key = jax.random.PRNGKey(0)
    k1, k2, k3, k4, k5, k6 = jax.random.split(key, 6)
    guided1 = jax.random.normal(k1, (B, 9, H, W), jnp.float32)
    guided2 = jax.random.normal(k2, (B, 9, H, W), jnp.float32)
    guided3 = jax.random.normal(k3, (B, 9, H, W), jnp.float32)
    fuse = jax.nn.softmax(jax.random.normal(k4, (B, 3, H, W), jnp.float32), axis=1)
    x = jax.random.normal(k5, (B, 1, H, W), jnp.float32)
    # sparse depth: a few non-negative "measured" pixels
    sparse = jnp.where(jax.random.uniform(k6, (B, 1, H, W)) > 0.9,
                       jnp.abs(jax.random.normal(k6, (B, 1, H, W))), 0.0)

    # dense path
    out = affinity_propagate1(guided1, guided2, guided3, fuse, x,
                              prop_time=prop_time)
    out = jax.block_until_ready(out)
    ref = _reference(guided1, guided2, guided3, fuse, x, prop_time)
    assert out.shape == (B, 1, H, W)
    assert jnp.allclose(out, ref, atol=1e-4, rtol=1e-4), "dense path mismatch"

    # sparse path
    out_s = affinity_propagate1(guided1, guided2, guided3, fuse, x,
                                sparse_depth=sparse, prop_time=prop_time)
    out_s = jax.block_until_ready(out_s)
    ref_s = _reference(guided1, guided2, guided3, fuse, x, prop_time,
                       sparse_depth=sparse)
    assert jnp.allclose(out_s, ref_s, atol=1e-4, rtol=1e-4), "sparse path mismatch"

    print("KERNEL_OK")
</pallas_src>

<mosaic_0001>
module attributes {stable_mosaic.version = 11 : i64} {
  func.func @kernel(%arg0: i32, %arg1: memref<1x9x16x16xf32, #tpu.memory_space<vmem>>, %arg2: memref<1x9x16x16xf32, #tpu.memory_space<vmem>>, %arg3: memref<1x9x16x16xf32, #tpu.memory_space<vmem>>, %arg4: memref<1x3x16x16xf32, #tpu.memory_space<vmem>>, %arg5: memref<1x1x16x16xf32, #tpu.memory_space<vmem>>, %arg6: memref<1x1x16x16xf32, #tpu.memory_space<vmem>>, %arg7: memref<32x256xf32, #tpu.memory_space<vmem>>) attributes {dimension_semantics = [#tpu.dimension_semantics<parallel>], iteration_bounds = array<i64: 2>, scalar_prefetch = 0 : i64, scratch_operands = 1 : i64, tpu.core_type = #tpu.core_type<tc>, window_params = [{transform_indices = @transform_0, window_bounds = array<i64: 1, 9, 16, 16>}, {transform_indices = @transform_1, window_bounds = array<i64: 1, 9, 16, 16>}, {transform_indices = @transform_2, window_bounds = array<i64: 1, 9, 16, 16>}, {transform_indices = @transform_3, window_bounds = array<i64: 1, 3, 16, 16>}, {transform_indices = @transform_4, window_bounds = array<i64: 1, 1, 16, 16>}, {transform_indices = @transform_5, window_bounds = array<i64: 1, 1, 16, 16>}]} {
    %c0 = arith.constant 0 : index
    %c0_0 = arith.constant 0 : index
    %c0_1 = arith.constant 0 : index
    %c0_2 = arith.constant 0 : index
    %0 = vector.load %arg4[%c0, %c0_0, %c0_1, %c0_2] : memref<1x3x16x16xf32, #tpu.memory_space<vmem>>, vector<1x3x16x16xf32>
    %1 = vector.shape_cast %0 : vector<1x3x16x16xf32> to vector<3x16x16xf32>
    %2 = vector.extract_strided_slice %1 {offsets = [0, 0, 0], sizes = [1, 16, 16], strides = [1, 1, 1]} : vector<3x16x16xf32> to vector<1x16x16xf32>
    %3 = vector.shape_cast %2 : vector<1x16x16xf32> to vector<16x16xf32>
    %c0_3 = arith.constant 0 : index
    %c0_4 = arith.constant 0 : index
    %c0_5 = arith.constant 0 : index
    %c0_6 = arith.constant 0 : index
    %4 = vector.load %arg1[%c0_3, %c0_4, %c0_5, %c0_6] : memref<1x9x16x16xf32, #tpu.memory_space<vmem>>, vector<1x9x16x16xf32>
    %5 = vector.shape_cast %4 : vector<1x9x16x16xf32> to vector<9x16x16xf32>
    %cst = arith.constant dense<0xFF800000> : vector<16x16xf32>
    %6 = vector.multi_reduction <maximumf>, %5, %cst [0] : vector<9x16x16xf32> to vector<16x16xf32>
    %7 = vector.shape_cast %6 : vector<16x16xf32> to vector<1x16x16xf32>
    %8 = vector.broadcast %7 : vector<1x16x16xf32> to vector<9x16x16xf32>
    %9 = arith.subf %5, %8 : vector<9x16x16xf32>
    %10 = math.exp %9 : vector<9x16x16xf32>
    %cst_7 = arith.constant dense<0.000000e+00> : vector<16x16xf32>
    %11 = vector.multi_reduction <add>, %10, %cst_7 [0] : vector<9x16x16xf32> to vector<16x16xf32>
    %cst_8 = arith.constant 1.000000e+00 : f32
    %12 = vector.broadcast %cst_8 : f32 to vector<16x16xf32>
    %13 = arith.divf %12, %11 : vector<16x16xf32>
    %14 = arith.mulf %3, %13 : vector<16x16xf32>
    %15 = vector.extract_strided_slice %1 {offsets = [1, 0, 0], sizes = [1, 16, 16], strides = [1, 1, 1]} : vector<3x16x16xf32> to vector<1x16x16xf32>
    %16 = vector.shape_cast %15 : vector<1x16x16xf32> to vector<16x16xf32>
    %c0_9 = arith.constant 0 : index
    %c0_10 = arith.constant 0 : index
    %c0_11 = arith.constant 0 : index
    %c0_12 = arith.constant 0 : index
    %17 = vector.load %arg2[%c0_9, %c0_10, %c0_11, %c0_12] : memref<1x9x16x16xf32, #tpu.memory_space<vmem>>, vector<1x9x16x16xf32>
    %18 = vector.shape_cast %17 : vector<1x9x16x16xf32> to vector<9x16x16xf32>
    %cst_13 = arith.constant dense<0xFF800000> : vector<16x16xf32>
    %19 = vector.multi_reduction <maximumf>, %18, %cst_13 [0] : vector<9x16x16xf32> to vector<16x16xf32>
    %20 = vector.shape_cast %19 : vector<16x16xf32> to vector<1x16x16xf32>
    %21 = vector.broadcast %20 : vector<1x16x16xf32> to vector<9x16x16xf32>
    %22 = arith.subf %18, %21 : vector<9x16x16xf32>
    %23 = math.exp %22 : vector<9x16x16xf32>
    %cst_14 = arith.constant dense<0.000000e+00> : vector<16x16xf32>
    %24 = vector.multi_reduction <add>, %23, %cst_14 [0] : vector<9x16x16xf32> to vector<16x16xf32>
    %cst_15 = arith.constant 1.000000e+00 : f32
    %25 = vector.broadcast %cst_15 : f32 to vector<16x16xf32>
    %26 = arith.divf %25, %24 : vector<16x16xf32>
    %27 = arith.mulf %16, %26 : vector<16x16xf32>
    %28 = vector.extract_strided_slice %1 {offsets = [2, 0, 0], sizes = [1, 16, 16], strides = [1, 1, 1]} : vector<3x16x16xf32> to vector<1x16x16xf32>
    %29 = vector.shape_cast %28 : vector<1x16x16xf32> to vector<16x16xf32>
    %c0_16 = arith.constant 0 : index
    %c0_17 = arith.constant 0 : index
    %c0_18 = arith.constant 0 : index
    %c0_19 = arith.constant 0 : index
    %30 = vector.load %arg3[%c0_16, %c0_17, %c0_18, %c0_19] : memref<1x9x16x16xf32, #tpu.memory_space<vmem>>, vector<1x9x16x16xf32>
    %31 = vector.shape_cast %30 : vector<1x9x16x16xf32> to vector<9x16x16xf32>
    %cst_20 = arith.constant dense<0xFF800000> : vector<16x16xf32>
    %32 = vector.multi_reduction <maximumf>, %31, %cst_20 [0] : vector<9x16x16xf32> to vector<16x16xf32>
    %33 = vector.shape_cast %32 : vector<16x16xf32> to vector<1x16x16xf32>
    %34 = vector.broadcast %33 : vector<1x16x16xf32> to vector<9x16x16xf32>
    %35 = arith.subf %31, %34 : vector<9x16x16xf32>
    %36 = math.exp %35 : vector<9x16x16xf32>
    %cst_21 = arith.constant dense<0.000000e+00> : vector<16x16xf32>
    %37 = vector.multi_reduction <add>, %36, %cst_21 [0] : vector<9x16x16xf32> to vector<16x16xf32>
    %cst_22 = arith.constant 1.000000e+00 : f32
    %38 = vector.broadcast %cst_22 : f32 to vector<16x16xf32>
    %39 = arith.divf %38, %37 : vector<16x16xf32>
    %40 = arith.mulf %29, %39 : vector<16x16xf32>
    %41 = vector.extract_strided_slice %10 {offsets = [0, 0, 0], sizes = [1, 16, 16], strides = [1, 1, 1]} : vector<9x16x16xf32> to vector<1x16x16xf32>
    %42 = vector.shape_cast %41 : vector<1x16x16xf32> to vector<16x16xf32>
    %43 = arith.mulf %42, %14 : vector<16x16xf32>
    %44 = vector.extract_strided_slice %10 {offsets = [1, 0, 0], sizes = [1, 16, 16], strides = [1, 1, 1]} : vector<9x16x16xf32> to vector<1x16x16xf32>
    %45 = vector.shape_cast %44 : vector<1x16x16xf32> to vector<16x16xf32>
    %46 = arith.mulf %45, %14 : vector<16x16xf32>
    %47 = vector.extract_strided_slice %10 {offsets = [2, 0, 0], sizes = [1, 16, 16], strides = [1, 1, 1]} : vector<9x16x16xf32> to vector<1x16x16xf32>
    %48 = vector.shape_cast %47 : vector<1x16x16xf32> to vector<16x16xf32>
    %49 = arith.mulf %48, %14 : vector<16x16xf32>
    %50 = vector.extract_strided_slice %10 {offsets = [3, 0, 0], sizes = [1, 16, 16], strides = [1, 1, 1]} : vector<9x16x16xf32> to vector<1x16x16xf32>
    %51 = vector.shape_cast %50 : vector<1x16x16xf32> to vector<16x16xf32>
    %52 = arith.mulf %51, %14 : vector<16x16xf32>
    %53 = vector.extract_strided_slice %10 {offsets = [4, 0, 0], sizes = [1, 16, 16], strides = [1, 1, 1]} : vector<9x16x16xf32> to vector<1x16x16xf32>
    %54 = vector.shape_cast %53 : vector<1x16x16xf32> to vector<16x16xf32>
    %55 = arith.mulf %54, %14 : vector<16x16xf32>
    %56 = vector.extract_strided_slice %10 {offsets = [5, 0, 0], sizes = [1, 16, 16], strides = [1, 1, 1]} : vector<9x16x16xf32> to vector<1x16x16xf32>
    %57 = vector.shape_cast %56 : vector<1x16x16xf32> to vector<16x16xf32>
    %58 = arith.mulf %57, %14 : vector<16x16xf32>
    %59 = vector.extract_strided_slice %10 {offsets = [6, 0, 0], sizes = [1, 16, 16], strides = [1, 1, 1]} : vector<9x16x16xf32> to vector<1x16x16xf32>
    %60 = vector.shape_cast %59 : vector<1x16x16xf32> to vector<16x16xf32>
    %61 = arith.mulf %60, %14 : vector<16x16xf32>
    %62 = vector.extract_strided_slice %10 {offsets = [7, 0, 0], sizes = [1, 16, 16], strides = [1, 1, 1]} : vector<9x16x16xf32> to vector<1x16x16xf32>
    %63 = vector.shape_cast %62 : vector<1x16x16xf32> to vector<16x16xf32>
    %64 = arith.mulf %63, %14 : vector<16x16xf32>
    %65 = vector.extract_strided_slice %10 {offsets = [8, 0, 0], sizes = [1, 16, 16], strides = [1, 1, 1]} : vector<9x16x16xf32> to vector<1x16x16xf32>
    %66 = vector.shape_cast %65 : vector<1x16x16xf32> to vector<16x16xf32>
    %67 = arith.mulf %66, %14 : vector<16x16xf32>
    %68 = vector.extract_strided_slice %23 {offsets = [0, 0, 0], sizes = [1, 16, 16], strides = [1, 1, 1]} : vector<9x16x16xf32> to vector<1x16x16xf32>
    %69 = vector.shape_cast %68 : vector<1x16x16xf32> to vector<16x16xf32>
    %70 = arith.mulf %69, %27 : vector<16x16xf32>
    %71 = vector.extract_strided_slice %23 {offsets = [1, 0, 0], sizes = [1, 16, 16], strides = [1, 1, 1]} : vector<9x16x16xf32> to vector<1x16x16xf32>
    %72 = vector.shape_cast %71 : vector<1x16x16xf32> to vector<16x16xf32>
    %73 = arith.mulf %72, %27 : vector<16x16xf32>
    %74 = vector.extract_strided_slice %23 {offsets = [2, 0, 0], sizes = [1, 16, 16], strides = [1, 1, 1]} : vector<9x16x16xf32> to vector<1x16x16xf32>
    %75 = vector.shape_cast %74 : vector<1x16x16xf32> to vector<16x16xf32>
    %76 = arith.mulf %75, %27 : vector<16x16xf32>
    %77 = vector.extract_strided_slice %23 {offsets = [3, 0, 0], sizes = [1, 16, 16], strides = [1, 1, 1]} : vector<9x16x16xf32> to vector<1x16x16xf32>
    %78 = vector.shape_cast %77 : vector<1x16x16xf32> to vector<16x16xf32>
    %79 = arith.mulf %78, %27 : vector<16x16xf32>
    %80 = vector.extract_strided_slice %23 {offsets = [4, 0, 0], sizes = [1, 16, 16], strides = [1, 1, 1]} : vector<9x16x16xf32> to vector<1x16x16xf32>
    %81 = vector.shape_cast %80 : vector<1x16x16xf32> to vector<16x16xf32>
    %82 = arith.mulf %81, %27 : vector<16x16xf32>
    %83 = arith.addf %55, %82 : vector<16x16xf32>
    %84 = vector.extract_strided_slice %23 {offsets = [5, 0, 0], sizes = [1, 16, 16], strides = [1, 1, 1]} : vector<9x16x16xf32> to vector<1x16x16xf32>
    %85 = vector.shape_cast %84 : vector<1x16x16xf32> to vector<16x16xf32>
    %86 = arith.mulf %85, %27 : vector<16x16xf32>
    %87 = vector.extract_strided_slice %23 {offsets = [6, 0, 0], sizes = [1, 16, 16], strides = [1, 1, 1]} : vector<9x16x16xf32> to vector<1x16x16xf32>
    %88 = vector.shape_cast %87 : vector<1x16x16xf32> to vector<16x16xf32>
    %89 = arith.mulf %88, %27 : vector<16x16xf32>
    %90 = vector.extract_strided_slice %23 {offsets = [7, 0, 0], sizes = [1, 16, 16], strides = [1, 1, 1]} : vector<9x16x16xf32> to vector<1x16x16xf32>
    %91 = vector.shape_cast %90 : vector<1x16x16xf32> to vector<16x16xf32>
    %92 = arith.mulf %91, %27 : vector<16x16xf32>
    %93 = vector.extract_strided_slice %23 {offsets = [8, 0, 0], sizes = [1, 16, 16], strides = [1, 1, 1]} : vector<9x16x16xf32> to vector<1x16x16xf32>
    %94 = vector.shape_cast %93 : vector<1x16x16xf32> to vector<16x16xf32>
    %95 = arith.mulf %94, %27 : vector<16x16xf32>
    %96 = vector.extract_strided_slice %36 {offsets = [0, 0, 0], sizes = [1, 16, 16], strides = [1, 1, 1]} : vector<9x16x16xf32> to vector<1x16x16xf32>
    %97 = vector.shape_cast %96 : vector<1x16x16xf32> to vector<16x16xf32>
    %98 = arith.mulf %97, %40 : vector<16x16xf32>
    %99 = vector.extract_strided_slice %36 {offsets = [1, 0, 0], sizes = [1, 16, 16], strides = [1, 1, 1]} : vector<9x16x16xf32> to vector<1x16x16xf32>
    %100 = vector.shape_cast %99 : vector<1x16x16xf32> to vector<16x16xf32>
    %101 = arith.mulf %100, %40 : vector<16x16xf32>
    %102 = vector.extract_strided_slice %36 {offsets = [2, 0, 0], sizes = [1, 16, 16], strides = [1, 1, 1]} : vector<9x16x16xf32> to vector<1x16x16xf32>
    %103 = vector.shape_cast %102 : vector<1x16x16xf32> to vector<16x16xf32>
    %104 = arith.mulf %103, %40 : vector<16x16xf32>
    %105 = vector.extract_strided_slice %36 {offsets = [3, 0, 0], sizes = [1, 16, 16], strides = [1, 1, 1]} : vector<9x16x16xf32> to vector<1x16x16xf32>
    %106 = vector.shape_cast %105 : vector<1x16x16xf32> to vector<16x16xf32>
    %107 = arith.mulf %106, %40 : vector<16x16xf32>
    %108 = vector.extract_strided_slice %36 {offsets = [4, 0, 0], sizes = [1, 16, 16], strides = [1, 1, 1]} : vector<9x16x16xf32> to vector<1x16x16xf32>
    %109 = vector.shape_cast %108 : vector<1x16x16xf32> to vector<16x16xf32>
    %110 = arith.mulf %109, %40 : vector<16x16xf32>
    %111 = arith.addf %83, %110 : vector<16x16xf32>
    %112 = vector.extract_strided_slice %36 {offsets = [5, 0, 0], sizes = [1, 16, 16], strides = [1, 1, 1]} : vector<9x16x16xf32> to vector<1x16x16xf32>
    %113 = vector.shape_cast %112 : vector<1x16x16xf32> to vector<16x16xf32>
    %114 = arith.mulf %113, %40 : vector<16x16xf32>
    %115 = vector.extract_strided_slice %36 {offsets = [6, 0, 0], sizes = [1, 16, 16], strides = [1, 1, 1]} : vector<9x16x16xf32> to vector<1x16x16xf32>
    %116 = vector.shape_cast %115 : vector<1x16x16xf32> to vector<16x16xf32>
    %117 = arith.mulf %116, %40 : vector<16x16xf32>
    %118 = vector.extract_strided_slice %36 {offsets = [7, 0, 0], sizes = [1, 16, 16], strides = [1, 1, 1]} : vector<9x16x16xf32> to vector<1x16x16xf32>
    %119 = vector.shape_cast %118 : vector<1x16x16xf32> to vector<16x16xf32>
    %120 = arith.mulf %119, %40 : vector<16x16xf32>
    %121 = vector.extract_strided_slice %36 {offsets = [8, 0, 0], sizes = [1, 16, 16], strides = [1, 1, 1]} : vector<9x16x16xf32> to vector<1x16x16xf32>
    %122 = vector.shape_cast %121 : vector<1x16x16xf32> to vector<16x16xf32>
    %123 = arith.mulf %122, %40 : vector<16x16xf32>
    %c0_23 = arith.constant 0 : index
    %c0_24 = arith.constant 0 : index
    %c0_25 = arith.constant 0 : index
    %c0_26 = arith.constant 0 : index
    %124 = vector.load %arg5[%c0_23, %c0_24, %c0_25, %c0_26] : memref<1x1x16x16xf32, #tpu.memory_space<vmem>>, vector<1x1x16x16xf32>
    %125 = vector.shape_cast %124 : vector<1x1x16x16xf32> to vector<16x16xf32>
    %cst_27 = arith.constant 0.000000e+00 : f32
    %126 = vector.broadcast %cst_27 : f32 to vector<32x256xf32>
    %c0_28 = arith.constant 0 : index
    %c0_29 = arith.constant 0 : index
    %127 = vector.load %arg7[%c0_28, %c0_29] : memref<32x256xf32, #tpu.memory_space<vmem>>, vector<32x256xf32>
    tpu.vector_store %arg7[%c0_28, %c0_29], %126 {strides = array<i32>} : memref<32x256xf32, #tpu.memory_space<vmem>>, vector<32x256xf32>,
    %c8 = arith.constant 8 : index
    %c128 = arith.constant 128 : index
    %128 = vector.load %arg7[%c8, %c128] : memref<32x256xf32, #tpu.memory_space<vmem>>, vector<16x16xf32>
    tpu.vector_store %arg7[%c8, %c128], %125 {strides = array<i32>} : memref<32x256xf32, #tpu.memory_space<vmem>>, vector<16x16xf32>,
    %c0_30 = arith.constant 0 : index
    %c128_31 = arith.constant 128 : index
    %129 = vector.load %arg7[%c0_30, %c128_31] : memref<32x256xf32, #tpu.memory_space<vmem>>, vector<32x16xf32>
    %130 = vector.extract_strided_slice %129 {offsets = [5, 0], sizes = [16, 16], strides = [1, 1]} : vector<32x16xf32> to vector<16x16xf32>
    %131 = arith.mulf %101, %130 : vector<16x16xf32>
    %132 = vector.extract_strided_slice %129 {offsets = [6, 0], sizes = [16, 16], strides = [1, 1]} : vector<32x16xf32> to vector<16x16xf32>
    %133 = arith.mulf %73, %132 : vector<16x16xf32>
    %134 = arith.addf %131, %133 : vector<16x16xf32>
    %135 = vector.extract_strided_slice %129 {offsets = [7, 0], sizes = [16, 16], strides = [1, 1]} : vector<32x16xf32> to vector<16x16xf32>
    %136 = arith.mulf %46, %135 : vector<16x16xf32>
    %137 = arith.addf %134, %136 : vector<16x16xf32>
    %138 = vector.extract_strided_slice %129 {offsets = [8, 0], sizes = [16, 16], strides = [1, 1]} : vector<32x16xf32> to vector<16x16xf32>
    %139 = arith.mulf %111, %138 : vector<16x16xf32>
    %140 = arith.addf %137, %139 : vector<16x16xf32>
    %141 = vector.extract_strided_slice %129 {offsets = [9, 0], sizes = [16, 16], strides = [1, 1]} : vector<32x16xf32> to vector<16x16xf32>
    %142 = arith.mulf %64, %141 : vector<16x16xf32>
    %143 = arith.addf %140, %142 : vector<16x16xf32>
    %144 = vector.extract_strided_slice %129 {offsets = [10, 0], sizes = [16, 16], strides = [1, 1]} : vector<32x16xf32> to vector<16x16xf32>
    %145 = arith.mulf %92, %144 : vector<16x16xf32>
    %146 = arith.addf %143, %145 : vector<16x16xf32>
    %147 = vector.extract_strided_slice %129 {offsets = [11, 0], sizes = [16, 16], strides = [1, 1]} : vector<32x16xf32> to vector<16x16xf32>
    %148 = arith.mulf %120, %147 : vector<16x16xf32>
    %149 = arith.addf %146, %148 : vector<16x16xf32>
    %c0_32 = arith.constant 0 : index
    %c127 = arith.constant 127 : index
    %150 = vector.load %arg7[%c0_32, %c127] : memref<32x256xf32, #tpu.memory_space<vmem>>, vector<32x16xf32>
    %151 = vector.extract_strided_slice %150 {offsets = [7, 0], sizes = [16, 16], strides = [1, 1]} : vector<32x16xf32> to vector<16x16xf32>
    %152 = arith.mulf %43, %151 : vector<16x16xf32>
    %153 = arith.addf %149, %152 : vector<16x16xf32>
    %154 = vector.extract_strided_slice %150 {offsets = [8, 0], sizes = [16, 16], strides = [1, 1]} : vector<32x16xf32> to vector<16x16xf32>
    %155 = arith.mulf %52, %154 : vector<16x16xf32>
    %156 = arith.addf %153, %155 : vector<16x16xf32>
    %157 = vector.extract_strided_slice %150 {offsets = [9, 0], sizes = [16, 16], strides = [1, 1]} : vector<32x16xf32> to vector<16x16xf32>
    %158 = arith.mulf %61, %157 : vector<16x16xf32>
    %159 = arith.addf %156, %158 : vector<16x16xf32>
    %c0_33 = arith.constant 0 : index
    %c129 = arith.constant 129 : index
    %160 = vector.load %arg7[%c0_33, %c129] : memref<32x256xf32, #tpu.memory_space<vmem>>, vector<32x16xf32>
    %161 = vector.extract_strided_slice %160 {offsets = [7, 0], sizes = [16, 16], strides = [1, 1]} : vector<32x16xf32> to vector<16x16xf32>
    %162 = arith.mulf %49, %161 : vector<16x16xf32>
    %163 = arith.addf %159, %162 : vector<16x16xf32>
    %164 = vector.extract_strided_slice %160 {offsets = [8, 0], sizes = [16, 16], strides = [1, 1]} : vector<32x16xf32> to vector<16x16xf32>
    %165 = arith.mulf %58, %164 : vector<16x16xf32>
    %166 = arith.addf %163, %165 : vector<16x16xf32>
    %167 = vector.extract_strided_slice %160 {offsets = [9, 0], sizes = [16, 16], strides = [1, 1]} : vector<32x16xf32> to vector<16x16xf32>
    %168 = arith.mulf %67, %167 : vector<16x16xf32>
    %169 = arith.addf %166, %168 : vector<16x16xf32>
    %c0_34 = arith.constant 0 : index
    %c126 = arith.constant 126 : index
    %170 = vector.load %arg7[%c0_34, %c126] : memref<32x256xf32, #tpu.memory_space<vmem>>, vector<32x16xf32>
    %171 = vector.extract_strided_slice %170 {offsets = [6, 0], sizes = [16, 16], strides = [1, 1]} : vector<32x16xf32> to vector<16x16xf32>
    %172 = arith.mulf %70, %171 : vector<16x16xf32>
    %173 = arith.addf %169, %172 : vector<16x16xf32>
    %174 = vector.extract_strided_slice %170 {offsets = [8, 0], sizes = [16, 16], strides = [1, 1]} : vector<32x16xf32> to vector<16x16xf32>
    %175 = arith.mulf %79, %174 : vector<16x16xf32>
    %176 = arith.addf %173, %175 : vector<16x16xf32>
    %177 = vector.extract_strided_slice %170 {offsets = [10, 0], sizes = [16, 16], strides = [1, 1]} : vector<32x16xf32> to vector<16x16xf32>
    %178 = arith.mulf %89, %177 : vector<16x16xf32>
    %179 = arith.addf %176, %178 : vector<16x16xf32>
    %c0_35 = arith.constant 0 : index
    %c130 = arith.constant 130 : index
    %180 = vector.load %arg7[%c0_35, %c130] : memref<32x256xf32, #tpu.memory_space<vmem>>, vector<32x16xf32>
    %181 = vector.extract_strided_slice %180 {offsets = [6, 0], sizes = [16, 16], strides = [1, 1]} : vector<32x16xf32> to vector<16x16xf32>
    %182 = arith.mulf %76, %181 : vector<16x16xf32>
    %183 = arith.addf %179, %182 : vector<16x16xf32>
    %184 = vector.extract_strided_slice %180 {offsets = [8, 0], sizes = [16, 16], strides = [1, 1]} : vector<32x16xf32> to vector<16x16xf32>
    %185 = arith.mulf %86, %184 : vector<16x16xf32>
    %186 = arith.addf %183, %185 : vector<16x16xf32>
    %187 = vector.extract_strided_slice %180 {offsets = [10, 0], sizes = [16, 16], strides = [1, 1]} : vector<32x16xf32> to vector<16x16xf32>
    %188 = arith.mulf %95, %187 : vector<16x16xf32>
    %189 = arith.addf %186, %188 : vector<16x16xf32>
    %c0_36 = arith.constant 0 : index
    %c125 = arith.constant 125 : index
    %190 = vector.load %arg7[%c0_36, %c125] : memref<32x256xf32, #tpu.memory_space<vmem>>, vector<32x16xf32>
    %191 = vector.extract_strided_slice %190 {offsets = [5, 0], sizes = [16, 16], strides = [1, 1]} : vector<32x16xf32> to vector<16x16xf32>
    %192 = arith.mulf %98, %191 : vector<16x16xf32>
    %193 = arith.addf %189, %192 : vector<16x16xf32>
    %194 = vector.extract_strided_slice %190 {offsets = [8, 0], sizes = [16, 16], strides = [1, 1]} : vector<32x16xf32> to vector<16x16xf32>
    %195 = arith.mulf %107, %194 : vector<16x16xf32>
    %196 = arith.addf %193, %195 : vector<16x16xf32>
    %197 = vector.extract_strided_slice %190 {offsets = [11, 0], sizes = [16, 16], strides = [1, 1]} : vector<32x16xf32> to vector<16x16xf32>
    %198 = arith.mulf %117, %197 : vector<16x16xf32>
    %199 = arith.addf %196, %198 : vector<16x16xf32>
    %c0_37 = arith.constant 0 : index
    %c131 = arith.constant 131 : index
    %200 = vector.load %arg7[%c0_37, %c131] : memref<32x256xf32, #tpu.memory_space<vmem>>, vector<32x16xf32>
    %201 = vector.extract_strided_slice %200 {offsets = [5, 0], sizes = [16, 16], strides = [1, 1]} : vector<32x16xf32> to vector<16x16xf32>
    %202 = arith.mulf %104, %201 : vector<16x16xf32>
    %203 = arith.addf %199, %202 : vector<16x16xf32>
    %204 = vector.extract_strided_slice %200 {offsets = [8, 0], sizes = [16, 16], strides = [1, 1]} : vector<32x16xf32> to vector<16x16xf32>
    %205 = arith.mulf %114, %204 : vector<16x16xf32>
    %206 = arith.addf %203, %205 : vector<16x16xf32>
    %207 = vector.extract_strided_slice %200 {offsets = [11, 0], sizes = [16, 16], strides = [1, 1]} : vector<32x16xf32> to vector<16x16xf32>
    %208 = arith.mulf %123, %207 : vector<16x16xf32>
    %209 = arith.addf %206, %208 : vector<16x16xf32>
    %c8_38 = arith.constant 8 : index
    %c128_39 = arith.constant 128 : index
    %210 = vector.load %arg7[%c8_38, %c128_39] : memref<32x256xf32, #tpu.memory_space<vmem>>, vector<16x16xf32>
    tpu.vector_store %arg7[%c8_38, %c128_39], %209 {strides = array<i32>} : memref<32x256xf32, #tpu.memory_space<vmem>>, vector<16x16xf32>,
    %c0_40 = arith.constant 0 : index
    %c128_41 = arith.constant 128 : index
    %211 = vector.load %arg7[%c0_40, %c128_41] : memref<32x256xf32, #tpu.memory_space<vmem>>, vector<32x16xf32>
    %212 = vector.extract_strided_slice %211 {offsets = [5, 0], sizes = [16, 16], strides = [1, 1]} : vector<32x16xf32> to vector<16x16xf32>
    %213 = arith.mulf %101, %212 : vector<16x16xf32>
    %214 = vector.extract_strided_slice %211 {offsets = [6, 0], sizes = [16, 16], strides = [1, 1]} : vector<32x16xf32> to vector<16x16xf32>
    %215 = arith.mulf %73, %214 : vector<16x16xf32>
    %216 = arith.addf %213, %215 : vector<16x16xf32>
    %217 = vector.extract_strided_slice %211 {offsets = [7, 0], sizes = [16, 16], strides = [1, 1]} : vector<32x16xf32> to vector<16x16xf32>
    %218 = arith.mulf %46, %217 : vector<16x16xf32>
    %219 = arith.addf %216, %218 : vector<16x16xf32>
    %220 = vector.extract_strided_slice %211 {offsets = [8, 0], sizes = [16, 16], strides = [1, 1]} : vector<32x16xf32> to vector<16x16xf32>
    %221 = arith.mulf %111, %220 : vector<16x16xf32>
    %222 = arith.addf %219, %221 : vector<16x16xf32>
    %223 = vector.extract_strided_slice %211 {offsets = [9, 0], sizes = [16, 16], strides = [1, 1]} : vector<32x16xf32> to vector<16x16xf32>
    %224 = arith.mulf %64, %223 : vector<16x16xf32>
    %225 = arith.addf %222, %224 : vector<16x16xf32>
    %226 = vector.extract_strided_slice %211 {offsets = [10, 0], sizes = [16, 16], strides = [1, 1]} : vector<32x16xf32> to vector<16x16xf32>
    %227 = arith.mulf %92, %226 : vector<16x16xf32>
    %228 = arith.addf %225, %227 : vector<16x16xf32>
    %229 = vector.extract_strided_slice %211 {offsets = [11, 0], sizes = [16, 16], strides = [1, 1]} : vector<32x16xf32> to vector<16x16xf32>
    %230 = arith.mulf %120, %229 : vector<16x16xf32>
    %231 = arith.addf %228, %230 : vector<16x16xf32>
    %c0_42 = arith.constant 0 : index
    %c127_43 = arith.constant 127 : index
    %232 = vector.load %arg7[%c0_42, %c127_43] : memref<32x256xf32, #tpu.memory_space<vmem>>, vector<32x16xf32>
    %233 = vector.extract_strided_slice %232 {offsets = [7, 0], sizes = [16, 16], strides = [1, 1]} : vector<32x16xf32> to vector<16x16xf32>
    %234 = arith.mulf %43, %233 : vector<16x16xf32>
    %235 = arith.addf %231, %234 : vector<16x16xf32>
    %236 = vector.extract_strided_slice %232 {offsets = [8, 0], sizes = [16, 16], strides = [1, 1]} : vector<32x16xf32> to vector<16x16xf32>
    %237 = arith.mulf %52, %236 : vector<16x16xf32>
    %238 = arith.addf %235, %237 : vector<16x16xf32>
    %239 = vector.extract_strided_slice %232 {offsets = [9, 0], sizes = [16, 16], strides = [1, 1]} : vector<32x16xf32> to vector<16x16xf32>
    %240 = arith.mulf %61, %239 : vector<16x16xf32>
    %241 = arith.addf %238, %240 : vector<16x16xf32>
    %c0_44 = arith.constant 0 : index
    %c129_45 = arith.constant 129 : index
    %242 = vector.load %arg7[%c0_44, %c129_45] : memref<32x256xf32, #tpu.memory_space<vmem>>, vector<32x16xf32>
    %243 = vector.extract_strided_slice %242 {offsets = [7, 0], sizes = [16, 16], strides = [1, 1]} : vector<32x16xf32> to vector<16x16xf32>
    %244 = arith.mulf %49, %243 : vector<16x16xf32>
    %245 = arith.addf %241, %244 : vector<16x16xf32>
    %246 = vector.extract_strided_slice %242 {offsets = [8, 0], sizes = [16, 16], strides = [1, 1]} : vector<32x16xf32> to vector<16x16xf32>
    %247 = arith.mulf %58, %246 : vector<16x16xf32>
    %248 = arith.addf %245, %247 : vector<16x16xf32>
    %249 = vector.extract_strided_slice %242 {offsets = [9, 0], sizes = [16, 16], strides = [1, 1]} : vector<32x16xf32> to vector<16x16xf32>
    %250 = arith.mulf %67, %249 : vector<16x16xf32>
    %251 = arith.addf %248, %250 : vector<16x16xf32>
    %c0_46 = arith.constant 0 : index
    %c126_47 = arith.constant 126 : index
    %252 = vector.load %arg7[%c0_46, %c126_47] : memref<32x256xf32, #tpu.memory_space<vmem>>, vector<32x16xf32>
    %253 = vector.extract_strided_slice %252 {offsets = [6, 0], sizes = [16, 16], strides = [1, 1]} : vector<32x16xf32> to vector<16x16xf32>
    %254 = arith.mulf %70, %253 : vector<16x16xf32>
    %255 = arith.addf %251, %254 : vector<16x16xf32>
    %256 = vector.extract_strided_slice %252 {offsets = [8, 0], sizes = [16, 16], strides = [1, 1]} : vector<32x16xf32> to vector<16x16xf32>
    %257 = arith.mulf %79, %256 : vector<16x16xf32>
    %258 = arith.addf %255, %257 : vector<16x16xf32>
    %259 = vector.extract_strided_slice %252 {offsets = [10, 0], sizes = [16, 16], strides = [1, 1]} : vector<32x16xf32> to vector<16x16xf32>
    %260 = arith.mulf %89, %259 : vector<16x16xf32>
    %261 = arith.addf %258, %260 : vector<16x16xf32>
    %c0_48 = arith.constant 0 : index
    %c130_49 = arith.constant 130 : index
    %262 = vector.load %arg7[%c0_48, %c130_49] : memref<32x256xf32, #tpu.memory_space<vmem>>, vector<32x16xf32>
    %263 = vector.extract_strided_slice %262 {offsets = [6, 0], sizes = [16, 16], strides = [1, 1]} : vector<32x16xf32> to vector<16x16xf32>
    %264 = arith.mulf %76, %263 : vector<16x16xf32>
    %265 = arith.addf %261, %264 : vector<16x16xf32>
    %266 = vector.extract_strided_slice %262 {offsets = [8, 0], sizes = [16, 16], strides = [1, 1]} : vector<32x16xf32> to vector<16x16xf32>
    %267 = arith.mulf %86, %266 : vector<16x16xf32>
    %268 = arith.addf %265, %267 : vector<16x16xf32>
    %269 = vector.extract_strided_slice %262 {offsets = [10, 0], sizes = [16, 16], strides = [1, 1]} : vector<32x16xf32> to vector<16x16xf32>
    %270 = arith.mulf %95, %269 : vector<16x16xf32>
    %271 = arith.addf %268, %270 : vector<16x16xf32>
    %c0_50 = arith.constant 0 : index
    %c125_51 = arith.constant 125 : index
    %272 = vector.load %arg7[%c0_50, %c125_51] : memref<32x256xf32, #tpu.memory_space<vmem>>, vector<32x16xf32>
    %273 = vector.extract_strided_slice %272 {offsets = [5, 0], sizes = [16, 16], strides = [1, 1]} : vector<32x16xf32> to vector<16x16xf32>
    %274 = arith.mulf %98, %273 : vector<16x16xf32>
    %275 = arith.addf %271, %274 : vector<16x16xf32>
    %276 = vector.extract_strided_slice %272 {offsets = [8, 0], sizes = [16, 16], strides = [1, 1]} : vector<32x16xf32> to vector<16x16xf32>
    %277 = arith.mulf %107, %276 : vector<16x16xf32>
    %278 = arith.addf %275, %277 : vector<16x16xf32>
    %279 = vector.extract_strided_slice %272 {offsets = [11, 0], sizes = [16, 16], strides = [1, 1]} : vector<32x16xf32> to vector<16x16xf32>
    %280 = arith.mulf %117, %279 : vector<16x16xf32>
    %281 = arith.addf %278, %280 : vector<16x16xf32>
    %c0_52 = arith.constant 0 : index
    %c131_53 = arith.constant 131 : index
    %282 = vector.load %arg7[%c0_52, %c131_53] : memref<32x256xf32, #tpu.memory_space<vmem>>, vector<32x16xf32>
    %283 = vector.extract_strided_slice %282 {offsets = [5, 0], sizes = [16, 16], strides = [1, 1]} : vector<32x16xf32> to vector<16x16xf32>
    %284 = arith.mulf %104, %283 : vector<16x16xf32>
    %285 = arith.addf %281, %284 : vector<16x16xf32>
    %286 = vector.extract_strided_slice %282 {offsets = [8, 0], sizes = [16, 16], strides = [1, 1]} : vector<32x16xf32> to vector<16x16xf32>
    %287 = arith.mulf %114, %286 : vector<16x16xf32>
    %288 = arith.addf %285, %287 : vector<16x16xf32>
    %289 = vector.extract_strided_slice %282 {offsets = [11, 0], sizes = [16, 16], strides = [1, 1]} : vector<32x16xf32> to vector<16x16xf32>
    %290 = arith.mulf %123, %289 : vector<16x16xf32>
    %291 = arith.addf %288, %290 : vector<16x16xf32>
    %c0_54 = arith.constant 0 : index
    %c0_55 = arith.constant 0 : index
    %c0_56 = arith.constant 0 : index
    %c0_57 = arith.constant 0 : index
    %292 = vector.load %arg6[%c0_54, %c0_55, %c0_56, %c0_57] : memref<1x1x16x16xf32, #tpu.memory_space<vmem>>, vector<1x1x16x16xf32>
    %293 = vector.shape_cast %292 : vector<1x1x16x16xf32> to vector<16x16xf32>
    %294 = vector.shape_cast %291 : vector<16x16xf32> to vector<1x1x16x16xf32>
    tpu.vector_store %arg6[%c0_54, %c0_55, %c0_56, %c0_57], %294 {strides = array<i32>} : memref<1x1x16x16xf32, #tpu.memory_space<vmem>>, vector<1x1x16x16xf32>,
    return
  }
  func.func @transform_0(%arg0: i32) -> (i32, i32, i32, i32) {
    %c0_i32 = arith.constant 0 : i32
    %c0_i32_0 = arith.constant 0 : i32
    %c0_i32_1 = arith.constant 0 : i32
    %c0_i32_2 = arith.constant 0 : i32
    return %arg0, %c0_i32, %c0_i32_0, %c0_i32_1 : i32, i32, i32, i32
  }
  func.func @transform_1(%arg0: i32) -> (i32, i32, i32, i32) {
    %c0_i32 = arith.constant 0 : i32
    %c0_i32_0 = arith.constant 0 : i32
    %c0_i32_1 = arith.constant 0 : i32
    %c0_i32_2 = arith.constant 0 : i32
    return %arg0, %c0_i32, %c0_i32_0, %c0_i32_1 : i32, i32, i32, i32
  }
  func.func @transform_2(%arg0: i32) -> (i32, i32, i32, i32) {
    %c0_i32 = arith.constant 0 : i32
    %c0_i32_0 = arith.constant 0 : i32
    %c0_i32_1 = arith.constant 0 : i32
    %c0_i32_2 = arith.constant 0 : i32
    return %arg0, %c0_i32, %c0_i32_0, %c0_i32_1 : i32, i32, i32, i32
  }
  func.func @transform_3(%arg0: i32) -> (i32, i32, i32, i32) {
    %c0_i32 = arith.constant 0 : i32
    %c0_i32_0 = arith.constant 0 : i32
    %c0_i32_1 = arith.constant 0 : i32
    %c0_i32_2 = arith.constant 0 : i32
    return %arg0, %c0_i32, %c0_i32_0, %c0_i32_1 : i32, i32, i32, i32
  }
  func.func @transform_4(%arg0: i32) -> (i32, i32, i32, i32) {
    %c0_i32 = arith.constant 0 : i32
    %c0_i32_0 = arith.constant 0 : i32
    %c0_i32_1 = arith.constant 0 : i32
    %c0_i32_2 = arith.constant 0 : i32
    return %arg0, %c0_i32, %c0_i32_0, %c0_i32_1 : i32, i32, i32, i32
  }
  func.func @transform_5(%arg0: i32) -> (i32, i32, i32, i32) {
    %c0_i32 = arith.constant 0 : i32
    %c0_i32_0 = arith.constant 0 : i32
    %c0_i32_1 = arith.constant 0 : i32
    %c0_i32_2 = arith.constant 0 : i32
    return %arg0, %c0_i32, %c0_i32_0, %c0_i32_1 : i32, i32, i32, i32
  }
}

</mosaic_0001>

<llo_original>
// kernel: tpu_custom_call.1
$region0: #{tpu_custom_call.1}
  #allocation0 [shape = 'u32[]', space=smem, size = 0x4, offset = 0x4, fixed_abs, tag = 'smem constant byte address 0x4 - core index']
  #allocation1 [shape = 'u32[144,128]{1,0:T(1,128)}', space=vmem, size = 0x12000, scoped, tag = 'internal scratch']
  #allocation2 [shape = 'f32[32,256]{1,0:T(8,128)}', space=vmem, size = 0x8000, scoped, tag = 'scratch operand']
  %s0 = inlined_call_operand.hbm [shape: f32[2,9,16,16], index: 0, kind: input, shape index: {}]
  %s1 = inlined_call_operand.hbm [shape: f32[2,9,16,16], index: 1, kind: input, shape index: {}]
  %s2 = inlined_call_operand.hbm [shape: f32[2,9,16,16], index: 2, kind: input, shape index: {}]
  %s3 = inlined_call_operand.hbm [shape: f32[2,3,16,16], index: 3, kind: input, shape index: {}]
  %s4 = inlined_call_operand.hbm [shape: f32[2,1,16,16], index: 4, kind: input, shape index: {}]
  %s5 = inlined_call_operand.hbm [shape: f32[2,1,16,16], index: 5, kind: output, shape index: {}]
  %s6 = sld [smem:[#allocation0]]
  $region73: #{tpu_custom_call.1} parent=0
    _
  %s8 = ssub.s32 1, %s6
  %s9 = scalar_select 0, %s8, %s6
  $region1: #{tpu_custom_call.1} parent=0
    #allocation3 [shape = 'u8[147456]{0}', space=vmem, size = 0x24000, scoped, tag = 'input window, operand 0']
    #allocation4 [shape = 's32[2]{0}', space=sflag, size = 0x8, scoped, tag = 'scoped memory for tpu_custom_call.1']
    #allocation5 [shape = 's32[2]{0}', space=sflag, size = 0x8, scoped, tag = 'scoped memory for tpu_custom_call.1']
    #allocation6 [shape = 'u8[147456]{0}', space=vmem, size = 0x24000, scoped, tag = 'input window, operand 1']
    #allocation7 [shape = 's32[2]{0}', space=sflag, size = 0x8, scoped, tag = 'scoped memory for tpu_custom_call.1']
    #allocation8 [shape = 'u8[147456]{0}', space=vmem, size = 0x24000, scoped, tag = 'input window, operand 2']
    #allocation9 [shape = 'u8[49152]{0}', space=vmem, size = 0xc000, scoped, tag = 'input window, operand 3']
    #allocation10 [shape = 's32[2]{0}', space=sflag, size = 0x8, scoped, tag = 'scoped memory for tpu_custom_call.1']
    #allocation11 [shape = 'u8[16384]{0}', space=vmem, size = 0x4000, scoped, tag = 'input window, operand 4']
    #allocation12 [shape = 'u8[16384]{0}', space=vmem, size = 0x4000, scoped, tag = 'output window, operand 0']
    %10 = vsyncpa [#allocation4], 0
    %s11 = scalar_lea.sflag [#allocation4], 1
    %12 = vsyncpa %s11, 0
    %13 = vsyncpa [#allocation7], 0
    %s14 = scalar_lea.sflag [#allocation7], 1
    %15 = vsyncpa %s14, 0
    %16 = vsyncpa [#allocation10], 0
    %s17 = scalar_lea.sflag [#allocation10], 1
    %18 = vsyncpa %s17, 0
    %19 = vsyncpa [#allocation5], 0
    %s20 = scalar_lea.sflag [#allocation5], 1
    %21 = vsyncpa %s20, 0
    loop: start=0, step=1, limit=4
    $region2: #{tpu_custom_call.1} parent=1 // loop_pre_header
      _
    $region3: #{tpu_custom_call.1} parent=1 // loop_header
      %s23 = sphi 0, %s27
      %p24 = scmp.ge.s32.totalorder %s23, 4
      %s33 = sphi 0, %s35
      %s36 = sphi 0, %s33
      %s37 = sphi 0, %s36
      %s53 = sphi 0, %s37
      %s59 = sphi 0, %s61
      %s62 = sphi 0, %s59
      %s63 = sphi 0, %s62
      %s79 = sphi 0, %s63
      %s85 = sphi 0, %s87
      %s88 = sphi 0, %s85
      %s89 = sphi 0, %s88
      %s105 = sphi 0, %s89
      %s111 = sphi 0, %s113
      %s114 = sphi 0, %s111
      %s115 = sphi 0, %s114
      %s131 = sphi 0, %s115
      %s137 = sphi 0, %s139
      %s140 = sphi 0, %s137
      %s141 = sphi 0, %s140
      %s157 = sphi 0, %s141
      %s163 = sphi 0, %s165
      %s166 = sphi 0, %s163
      %s167 = sphi 0, %s166
      %s183 = sphi 0, %s167
    $region4: #{tpu_custom_call.1} parent=1 // loop_header_branch
      %26 = sbr.rel (%p24) target = $region8
    $region5: #{tpu_custom_call.1} parent=1 // loop_body
      %s28 = ssub.s32 %s23, 1
      %s29 = ssub.s32 %s23, 2
      %s30 = sadd.s32 %s23, 1
      %s31 = ssub.s32 %s23, %s30
      %p32 = scmp.eq.s32.totalorder %s31, 0
      %s34 = sadd.s32 %s33, 1
      %s35 = scalar_select %p32, %s33, %s34
      %p38 = pneg %p32
      %p39 = scmp.eq.s32.totalorder %s23, 1
      %p40 = por %p38, %p39
      %p41 = scmp.ne.s32.totalorder %s33, %s36
      %p42 = scmp.eq.s32.totalorder %s23, 0
      %p43 = por %p41, %p42
      %p44 = scmp.ne.s32.totalorder %s33, %s36
      %p45 = scmp.eq.s32.totalorder %s28, 1
      %p46 = por %p44, %p45
      %p47 = scmp.ne.s32.totalorder %s36, %s37
      %p48 = scmp.eq.s32.totalorder %s28, 0
      %p49 = por %p47, %p48
      %p50 = scmp.ne.s32.totalorder %s36, %s37
      %p51 = scmp.eq.s32.totalorder %s29, 1
      %p52 = por %p50, %p51
      %p54 = scmp.ne.s32.totalorder %s37, %s53
      %p55 = scmp.eq.s32.totalorder %s29, 0
      %p56 = por %p54, %p55
      %s57 = ssub.s32 %s23, %s30
      %p58 = scmp.eq.s32.totalorder %s57, 0
      %s60 = sadd.s32 %s59, 1
      %s61 = scalar_select %p58, %s59, %s60
      %p64 = pneg %p58
      %p65 = scmp.eq.s32.totalorder %s23, 1
      %p66 = por %p64, %p65
      %p67 = scmp.ne.s32.totalorder %s59, %s62
      %p68 = scmp.eq.s32.totalorder %s23, 0
      %p69 = por %p67, %p68
      %p70 = scmp.ne.s32.totalorder %s59, %s62
      %p71 = scmp.eq.s32.totalorder %s28, 1
      %p72 = por %p70, %p71
      %p73 = scmp.ne.s32.totalorder %s62, %s63
      %p74 = scmp.eq.s32.totalorder %s28, 0
      %p75 = por %p73, %p74
      %p76 = scmp.ne.s32.totalorder %s62, %s63
      %p77 = scmp.eq.s32.totalorder %s29, 1
      %p78 = por %p76, %p77
      %p80 = scmp.ne.s32.totalorder %s63, %s79
      %p81 = scmp.eq.s32.totalorder %s29, 0
      %p82 = por %p80, %p81
      %s83 = ssub.s32 %s23, %s30
      %p84 = scmp.eq.s32.totalorder %s83, 0
      %s86 = sadd.s32 %s85, 1
      %s87 = scalar_select %p84, %s85, %s86
      %p90 = pneg %p84
      %p91 = scmp.eq.s32.totalorder %s23, 1
      %p92 = por %p90, %p91
      %p93 = scmp.ne.s32.totalorder %s85, %s88
      %p94 = scmp.eq.s32.totalorder %s23, 0
      %p95 = por %p93, %p94
      %p96 = scmp.ne.s32.totalorder %s85, %s88
      %p97 = scmp.eq.s32.totalorder %s28, 1
      %p98 = por %p96, %p97
      %p99 = scmp.ne.s32.totalorder %s88, %s89
      %p100 = scmp.eq.s32.totalorder %s28, 0
      %p101 = por %p99, %p100
      %p102 = scmp.ne.s32.totalorder %s88, %s89
      %p103 = scmp.eq.s32.totalorder %s29, 1
      %p104 = por %p102, %p103
      %p106 = scmp.ne.s32.totalorder %s89, %s105
      %p107 = scmp.eq.s32.totalorder %s29, 0
      %p108 = por %p106, %p107
      %s109 = ssub.s32 %s23, %s30
      %p110 = scmp.eq.s32.totalorder %s109, 0
      %s112 = sadd.s32 %s111, 1
      %s113 = scalar_select %p110, %s111, %s112
      %p116 = pneg %p110
      %p117 = scmp.eq.s32.totalorder %s23, 1
      %p118 = por %p116, %p117
      %p119 = scmp.ne.s32.totalorder %s111, %s114
      %p120 = scmp.eq.s32.totalorder %s23, 0
      %p121 = por %p119, %p120
      %p122 = scmp.ne.s32.totalorder %s111, %s114
      %p123 = scmp.eq.s32.totalorder %s28, 1
      %p124 = por %p122, %p123
      %p125 = scmp.ne.s32.totalorder %s114, %s115
      %p126 = scmp.eq.s32.totalorder %s28, 0
      %p127 = por %p125, %p126
      %p128 = scmp.ne.s32.totalorder %s114, %s115
      %p129 = scmp.eq.s32.totalorder %s29, 1
      %p130 = por %p128, %p129
      %p132 = scmp.ne.s32.totalorder %s115, %s131
      %p133 = scmp.eq.s32.totalorder %s29, 0
      %p134 = por %p132, %p133
      %s135 = ssub.s32 %s23, %s30
      %p136 = scmp.eq.s32.totalorder %s135, 0
      %s138 = sadd.s32 %s137, 1
      %s139 = scalar_select %p136, %s137, %s138
      %p142 = pneg %p136
      %p143 = scmp.eq.s32.totalorder %s23, 1
      %p144 = por %p142, %p143
      %p145 = scmp.ne.s32.totalorder %s137, %s140
      %p146 = scmp.eq.s32.totalorder %s23, 0
      %p147 = por %p145, %p146
      %p148 = scmp.ne.s32.totalorder %s137, %s140
      %p149 = scmp.eq.s32.totalorder %s28, 1
      %p150 = por %p148, %p149
      %p151 = scmp.ne.s32.totalorder %s140, %s141
      %p152 = scmp.eq.s32.totalorder %s28, 0
      %p153 = por %p151, %p152
      %p154 = scmp.ne.s32.totalorder %s140, %s141
      %p155 = scmp.eq.s32.totalorder %s29, 1
      %p156 = por %p154, %p155
      %p158 = scmp.ne.s32.totalorder %s141, %s157
      %p159 = scmp.eq.s32.totalorder %s29, 0
      %p160 = por %p158, %p159
      %s161 = ssub.s32 %s23, %s30
      %p162 = scmp.eq.s32.totalorder %s161, 0
      %s164 = sadd.s32 %s163, 1
      %s165 = scalar_select %p162, %s163, %s164
      %p168 = pneg %p162
      %p169 = scmp.eq.s32.totalorder %s23, 1
      %p170 = por %p168, %p169
      %p171 = scmp.ne.s32.totalorder %s163, %s166
      %p172 = scmp.eq.s32.totalorder %s23, 0
      %p173 = por %p171, %p172
      %p174 = scmp.ne.s32.totalorder %s163, %s166
      %p175 = scmp.eq.s32.totalorder %s28, 1
      %p176 = por %p174, %p175
      %p177 = scmp.ne.s32.totalorder %s166, %s167
      %p178 = scmp.eq.s32.totalorder %s28, 0
      %p179 = por %p177, %p178
      %p180 = scmp.ne.s32.totalorder %s166, %s167
      %p181 = scmp.eq.s32.totalorder %s29, 1
      %p182 = por %p180, %p181
      %p184 = scmp.ne.s32.totalorder %s167, %s183
      %p185 = scmp.eq.s32.totalorder %s29, 0
      %p186 = por %p184, %p185
      %p187 = scmp.le.s32.totalorder 1, %s23
      %p188 = scmp.lt.s32.totalorder %s23, 3
      %p189 = pnand %p187, %p188
      %p190 = pneg %p189
      // Predicated region
      $region9: #{tpu_custom_call.1} parent=5 // pred_check
        _
      $region10: #{tpu_custom_call.1} parent=5 // pred_check_branch
        %192 = sbr.rel (%p189) target = $region12
      $region11: #{tpu_custom_call.1} parent=5 // pred_region
        %s193 = ssub.s32 %s23, 1
      $region12: #{tpu_custom_call.1} parent=5 // pred_fallthru
        _
      %p194 = scmp.lt.s32.totalorder %s23, 2
      // Predicated region
      $region13: #{tpu_custom_call.1} parent=5 // pred_check
        %p195 = pneg %p194
      $region14: #{tpu_custom_call.1} parent=5 // pred_check_branch
        %197 = sbr.rel (%p195) target = $region16
      $region15: #{tpu_custom_call.1} parent=5 // pred_region
        // Predicated region
        $region17: #{tpu_custom_call.1} parent=15 // pred_check
          %p198 = pneg %p43
        $region18: #{tpu_custom_call.1} parent=15 // pred_check_branch
          %200 = sbr.rel (%p198) target = $region20
        $region19: #{tpu_custom_call.1} parent=15 // pred_region
          %s201 = sand.u32 %s33, 1
          %s202 = scalar_lea.sflag [#allocation4], %s201
          %s203 = sand.u32 %s33, 1
          %s204 = smul.addr %s203, 144
          %s205 = scalar_lea.vmem [#allocation3], %s204
          %s207 = ssub.s32 2304, 2304
          %208 = vsyncadd %s202, %s207
          %s209 = smul.addr %s23, 18
          %s210 = smul.addr %s209, 128
          %s211 = scalar_lea.hbm %s0, %s210
          %s212 = sshll.u32 %s205, 4
          %s213 = int_to_ptr.vmem [resolvable:$true] %s212
          %218 = dma.hbm_to_vmem [thread:$0]  %s211, 2304, %s213, %s202, 128, 128, 8
        $region20: #{tpu_custom_call.1} parent=15 // pred_fallthru
          _
        // Predicated region
        $region21: #{tpu_custom_call.1} parent=15 // pred_check
          %p219 = pneg %p69
        $region22: #{tpu_custom_call.1} parent=15 // pred_check_branch
          %221 = sbr.rel (%p219) target = $region24
        $region23: #{tpu_custom_call.1} parent=15 // pred_region
          %s222 = sand.u32 %s23, 1
          %s223 = scalar_lea.sflag [#allocation7], %s222
          %s224 = sand.u32 %s59, 1
          %s225 = smul.addr %s224, 144
          %s226 = scalar_lea.vmem [#allocation6], %s225
          %s228 = ssub.s32 2304, 2304
          %229 = vsyncadd %s223, %s228
          %s230 = smul.addr %s23, 18
          %s231 = smul.addr %s230, 128
          %s232 = scalar_lea.hbm %s1, %s231
          %s233 = sshll.u32 %s226, 4
          %s234 = int_to_ptr.vmem [resolvable:$true] %s233
          %239 = dma.hbm_to_vmem [thread:$0]  %s232, 2304, %s234, %s223, 128, 128, 8
        $region24: #{tpu_custom_call.1} parent=15 // pred_fallthru
          _
        // Predicated region
        $region25: #{tpu_custom_call.1} parent=15 // pred_check
          %p240 = pneg %p95
        $region26: #{tpu_custom_call.1} parent=15 // pred_check_branch
          %242 = sbr.rel (%p240) target = $region28
        $region27: #{tpu_custom_call.1} parent=15 // pred_region
          %s243 = sand.u32 %s23, 1
          %s244 = scalar_lea.sflag [#allocation7], %s243
          %s245 = sand.u32 %s85, 1
          %s246 = smul.addr %s245, 144
          %s247 = scalar_lea.vmem [#allocation8], %s246
          %s249 = ssub.s32 2304, 2304
          %250 = vsyncadd %s244, %s249
          %s251 = smul.addr %s23, 18
          %s252 = smul.addr %s251, 128
          %s253 = scalar_lea.hbm %s2, %s252
          %s254 = sshll.u32 %s247, 4
          %s255 = int_to_ptr.vmem [resolvable:$true] %s254
          %260 = dma.hbm_to_vmem [thread:$0]  %s253, 2304, %s255, %s244, 128, 128, 8
        $region28: #{tpu_custom_call.1} parent=15 // pred_fallthru
          _
        // Predicated region
        $region29: #{tpu_custom_call.1} parent=15 // pred_check
          %p261 = pneg %p121
        $region30: #{tpu_custom_call.1} parent=15 // pred_check_branch
          %263 = sbr.rel (%p261) target = $region32
        $region31: #{tpu_custom_call.1} parent=15 // pred_region
          %s264 = sand.u32 %s23, 1
          %s265 = scalar_lea.sflag [#allocation10], %s264
          %s266 = sand.u32 %s111, 1
          %s267 = smul.addr %s266, 48
          %s268 = scalar_lea.vmem [#allocation9], %s267
          %s270 = ssub.s32 768, 768
          %271 = vsyncadd %s265, %s270
          %s272 = smul.addr %s23, 6
          %s273 = smul.addr %s272, 128
          %s274 = scalar_lea.hbm %s3, %s273
          %s275 = sshll.u32 %s268, 4
          %s276 = int_to_ptr.vmem [resolvable:$true] %s275
          %281 = dma.hbm_to_vmem [thread:$0]  %s274, 768, %s276, %s265, 128, 128, 8
        $region32: #{tpu_custom_call.1} parent=15 // pred_fallthru
          _
        // Predicated region
        $region33: #{tpu_custom_call.1} parent=15 // pred_check
          %p282 = pneg %p147
        $region34: #{tpu_custom_call.1} parent=15 // pred_check_branch
          %284 = sbr.rel (%p282) target = $region36
        $region35: #{tpu_custom_call.1} parent=15 // pred_region
          %s285 = sand.u32 %s23, 1
          %s286 = scalar_lea.sflag [#allocation10], %s285
          %s287 = sand.u32 %s137, 1
          %s288 = smul.addr %s287, 16
          %s289 = scalar_lea.vmem [#allocation11], %s288
          %s291 = ssub.s32 256, 256
          %292 = vsyncadd %s286, %s291
          %s293 = smul.addr %s23, 2
          %s294 = smul.addr %s293, 128
          %s295 = scalar_lea.hbm %s4, %s294
          %s296 = sshll.u32 %s289, 4
          %s297 = int_to_ptr.vmem [resolvable:$true] %s296
          %302 = dma.hbm_to_vmem [thread:$0]  %s295, 256, %s297, %s286, 128, 128, 8
        $region36: #{tpu_custom_call.1} parent=15 // pred_fallthru
          _
      $region16: #{tpu_custom_call.1} parent=5 // pred_fallthru
        _
      %p303 = scmp.le.s32.totalorder 1, %s23
      %p304 = scmp.lt.s32.totalorder %s23, 3
      %p305 = pnand %p303, %p304
      %p306 = pneg %p305
      // Predicated region
      $region37: #{tpu_custom_call.1} parent=5 // pred_check
        _
      $region38: #{tpu_custom_call.1} parent=5 // pred_check_branch
        %308 = sbr.rel (%p305) target = $region40
      $region39: #{tpu_custom_call.1} parent=5 // pred_region
        %s309 = ssub.s32 %s23, 1
        %s310 = sand.u32 %s36, 1
        %s311 = scalar_lea.sflag [#allocation4], %s310
        %s312 = sand.u32 %s36, 1
        %s313 = smul.addr %s312, 144
        %s314 = scalar_lea.vmem [#allocation3], %s313
        // Predicated region
        $region41: #{tpu_custom_call.1} parent=39 // pred_check
          %p315 = pneg %p49
        $region42: #{tpu_custom_call.1} parent=39 // pred_check_branch
          %317 = sbr.rel (%p315) target = $region44
        $region43: #{tpu_custom_call.1} parent=39 // pred_region
          %318 = dma.done %s311, 2304
        $region44: #{tpu_custom_call.1} parent=39 // pred_fallthru
          _
        %s319 = sand.u32 %s28, 1
        %s320 = scalar_lea.sflag [#allocation7], %s319
        %s321 = sand.u32 %s62, 1
        %s322 = smul.addr %s321, 144
        %s323 = scalar_lea.vmem [#allocation6], %s322
        // Predicated region
        $region45: #{tpu_custom_call.1} parent=39 // pred_check
          %p324 = pneg %p75
        $region46: #{tpu_custom_call.1} parent=39 // pred_check_branch
          %326 = sbr.rel (%p324) target = $region48
        $region47: #{tpu_custom_call.1} parent=39 // pred_region
          %327 = dma.done %s320, 2304
        $region48: #{tpu_custom_call.1} parent=39 // pred_fallthru
          _
        %s328 = sand.u32 %s28, 1
        %s329 = scalar_lea.sflag [#allocation7], %s328
        %s330 = sand.u32 %s88, 1
        %s331 = smul.addr %s330, 144
        %s332 = scalar_lea.vmem [#allocation8], %s331
        // Predicated region
        $region49: #{tpu_custom_call.1} parent=39 // pred_check
          %p333 = pneg %p101
        $region50: #{tpu_custom_call.1} parent=39 // pred_check_branch
          %335 = sbr.rel (%p333) target = $region52
        $region51: #{tpu_custom_call.1} parent=39 // pred_region
          %336 = dma.done %s329, 2304
        $region52: #{tpu_custom_call.1} parent=39 // pred_fallthru
          _
        %s337 = sand.u32 %s28, 1
        %s338 = scalar_lea.sflag [#allocation10], %s337
        %s339 = sand.u32 %s114, 1
        %s340 = smul.addr %s339, 48
        %s341 = scalar_lea.vmem [#allocation9], %s340
        // Predicated region
        $region53: #{tpu_custom_call.1} parent=39 // pred_check
          %p342 = pneg %p127
        $region54: #{tpu_custom_call.1} parent=39 // pred_check_branch
          %344 = sbr.rel (%p342) target = $region56
        $region55: #{tpu_custom_call.1} parent=39 // pred_region
          %345 = dma.done %s338, 768
        $region56: #{tpu_custom_call.1} parent=39 // pred_fallthru
          _
        %s346 = sand.u32 %s28, 1
        %s347 = scalar_lea.sflag [#allocation10], %s346
        %s348 = sand.u32 %s140, 1
        %s349 = smul.addr %s348, 16
        %s350 = scalar_lea.vmem [#allocation11], %s349
        // Predicated region
        $region57: #{tpu_custom_call.1} parent=39 // pred_check
          %p351 = pneg %p153
        $region58: #{tpu_custom_call.1} parent=39 // pred_check_branch
          %353 = sbr.rel (%p351) target = $region60
        $region59: #{tpu_custom_call.1} parent=39 // pred_region
          %354 = dma.done %s347, 256
        $region60: #{tpu_custom_call.1} parent=39 // pred_fallthru
          _
        %s355 = sand.u32 %s36, 1
        %s356 = scalar_lea.sflag [#allocation4], %s355
        %s357 = sand.u32 %s36, 1
        %s358 = smul.addr %s357, 144
        %s359 = scalar_lea.vmem [#allocation3], %s358
        %p360 = pneg %p49
        %p361 = pneg %p46
        %s362 = sand.u32 %s28, 1
        %s363 = scalar_lea.sflag [#allocation7], %s362
        %s364 = sand.u32 %s62, 1
        %s365 = smul.addr %s364, 144
        %s366 = scalar_lea.vmem [#allocation6], %s365
        %p367 = pneg %p75
        %p368 = pneg %p72
        %s369 = sand.u32 %s28, 1
        %s370 = scalar_lea.sflag [#allocation7], %s369
        %s371 = sand.u32 %s88, 1
        %s372 = smul.addr %s371, 144
        %s373 = scalar_lea.vmem [#allocation8], %s372
        %p374 = pneg %p101
        %p375 = pneg %p98
        %s376 = sand.u32 %s28, 1
        %s377 = scalar_lea.sflag [#allocation10], %s376
        %s378 = sand.u32 %s114, 1
        %s379 = smul.addr %s378, 48
        %s380 = scalar_lea.vmem [#allocation9], %s379
        %p381 = pneg %p127
        %p382 = pneg %p124
        %s383 = sand.u32 %s28, 1
        %s384 = scalar_lea.sflag [#allocation10], %s383
        %s385 = sand.u32 %s140, 1
        %s386 = smul.addr %s385, 16
        %s387 = scalar_lea.vmem [#allocation11], %s386
        %p388 = pneg %p153
        %p389 = pneg %p150
        %p390 = pneg %p179
        %p391 = pneg %p176
        %s392 = sand.u32 %s166, 1
        %s393 = scalar_lea.sflag [#allocation5], %s392
        %s394 = sand.u32 %s166, 1
        %s395 = smul.addr %s394, 16
        %s396 = scalar_lea.vmem [#allocation12], %s395
        %v397 = vld [vmem:[%s341] sm:$0xff]
        %v398 = vld [vmem:[%s341 + $0x8] sm:$0xff]
        %v399 = vld [vmem:[%s341 + $0x10] sm:$0xff]
        %v400 = vld [vmem:[%s341 + $0x18] sm:$0xff]
        %v401 = vld [vmem:[%s341 + $0x20] sm:$0xff]
        %v402 = vld [vmem:[%s341 + $0x28] sm:$0xff]
        %v403 = vld [vmem:[%s314] sm:$0xff]
        %v404 = vld [vmem:[%s314 + $0x8] sm:$0xff]
        %v405 = vld [vmem:[%s314 + $0x10] sm:$0xff]
        %v406 = vld [vmem:[%s314 + $0x18] sm:$0xff]
        %v407 = vld [vmem:[%s314 + $0x20] sm:$0xff]
        %v408 = vld [vmem:[%s314 + $0x28] sm:$0xff]
        %v409 = vld [vmem:[%s314 + $0x30] sm:$0xff]
        %v410 = vld [vmem:[%s314 + $0x38] sm:$0xff]
        %v411 = vld [vmem:[%s314 + $0x40] sm:$0xff]
        %v412 = vld [vmem:[%s314 + $0x48] sm:$0xff]
        %v413 = vld [vmem:[%s314 + $0x50] sm:$0xff]
        %v414 = vld [vmem:[%s314 + $0x58] sm:$0xff]
        %v415 = vld [vmem:[%s314 + $0x60] sm:$0xff]
        %v416 = vld [vmem:[%s314 + $0x68] sm:$0xff]
        %v417 = vld [vmem:[%s314 + $0x70] sm:$0xff]
        %v418 = vld [vmem:[%s314 + $0x78] sm:$0xff]
        %v419 = vld [vmem:[%s314 + $0x80] sm:$0xff]
        %v420 = vld [vmem:[%s314 + $0x88] sm:$0xff]
        %vm421 = vcmask 130048
        %v422 = vsel %vm421, %v403, -inf
        %v423 = vsel %vm421, %v405, -inf
        %v424 = vsel %vm421, %v407, -inf
        %v425 = vmax.f32 %v422, %v424
        %v426 = vsel %vm421, %v409, -inf
        %v427 = vmax.f32 %v423, %v426
        %v428 = vsel %vm421, %v411, -inf
        %v429 = vmax.f32 %v425, %v428
        %v430 = vsel %vm421, %v413, -inf
        %v431 = vmax.f32 %v427, %v430
        %v432 = vsel %vm421, %v415, -inf
        %v433 = vmax.f32 %v429, %v432
        %v434 = vsel %vm421, %v417, -inf
        %v435 = vmax.f32 %v431, %v434
        %v436 = vsel %vm421, %v419, -inf
        %v437 = vmax.f32 %v433, %v436
        %v438 = vmax.f32 %v437, %v435
        %v439 = vsel %vm421, %v404, -inf
        %v440 = vsel %vm421, %v406, -inf
        %v441 = vsel %vm421, %v408, -inf
        %v442 = vmax.f32 %v439, %v441
        %v443 = vsel %vm421, %v410, -inf
        %v444 = vmax.f32 %v440, %v443
        %v445 = vsel %vm421, %v412, -inf
        %v446 = vmax.f32 %v442, %v445
        %v447 = vsel %vm421, %v414, -inf
        %v448 = vmax.f32 %v444, %v447
        %v449 = vsel %vm421, %v416, -inf
        %v450 = vmax.f32 %v446, %v449
        %v451 = vsel %vm421, %v418, -inf
        %v452 = vmax.f32 %v448, %v451
        %v453 = vsel %vm421, %v420, -inf
        %v454 = vmax.f32 %v450, %v453
        %v455 = vmax.f32 %v454, %v452
        %v456 = vsub.f32 %v403, %v438
        %v457 = vsub.f32 %v404, %v455
        %v458 = vsub.f32 %v405, %v438
        %v459 = vsub.f32 %v406, %v455
        %v460 = vsub.f32 %v407, %v438
        %v461 = vsub.f32 %v408, %v455
        %v462 = vsub.f32 %v409, %v438
        %v463 = vsub.f32 %v410, %v455
        %v464 = vsub.f32 %v411, %v438
        %v465 = vsub.f32 %v412, %v455
        %v466 = vsub.f32 %v413, %v438
        %v467 = vsub.f32 %v414, %v455
        %v468 = vsub.f32 %v415, %v438
        %v469 = vsub.f32 %v416, %v455
        %v470 = vsub.f32 %v417, %v438
        %v471 = vsub.f32 %v418, %v455
        %v472 = vsub.f32 %v419, %v438
        %v473 = vsub.f32 %v420, %v455
        %v474 = vmul.f32 %v456, 1.442695
        %v475 = vpow.pop %v474
        %v476 = vmul.f32 %v457, 1.442695
        %v477 = vpow.pop %v476
        %v478 = vmul.f32 %v458, 1.442695
        %v479 = vpow.pop %v478
        %v480 = vmul.f32 %v459, 1.442695
        %v481 = vpow.pop %v480
        %v482 = vmul.f32 %v460, 1.442695
        %v483 = vpow.pop %v482
        %v484 = vmul.f32 %v461, 1.442695
        %v485 = vpow.pop %v484
        %v486 = vmul.f32 %v462, 1.442695
        %v487 = vpow.pop %v486
        %v488 = vmul.f32 %v463, 1.442695
        %v489 = vpow.pop %v488
        %v490 = vmul.f32 %v464, 1.442695
        %v491 = vpow.pop %v490
        %v492 = vmul.f32 %v465, 1.442695
        %v493 = vpow.pop %v492
        %v494 = vmul.f32 %v466, 1.442695
        %v495 = vpow.pop %v494
        %v496 = vmul.f32 %v467, 1.442695
        %v497 = vpow.pop %v496
        %v498 = vmul.f32 %v468, 1.442695
        %v499 = vpow.pop %v498
        %v500 = vmul.f32 %v469, 1.442695
        %v501 = vpow.pop %v500
        %v502 = vmul.f32 %v470, 1.442695
        %v503 = vpow.pop %v502
        %v504 = vmul.f32 %v471, 1.442695
        %v505 = vpow.pop %v504
        %v506 = vmul.f32 %v472, 1.442695
        %v507 = vpow.pop %v506
        %v508 = vmul.f32 %v473, 1.442695
        %v509 = vpow.pop %v508
        %v510 = vsel %vm421, %v475, 0.0
        %v511 = vsel %vm421, %v479, 0.0
        %v512 = vadd.f32 %v510, %v511
        %v513 = vsel %vm421, %v483, 0.0
        %v514 = vadd.f32 %v512, %v513
        %v515 = vsel %vm421, %v487, 0.0
        %v516 = vadd.f32 %v514, %v515
        %v517 = vsel %vm421, %v491, 0.0
        %v518 = vadd.f32 %v516, %v517
        %v519 = vsel %vm421, %v495, 0.0
        %v520 = vadd.f32 %v518, %v519
        %v521 = vsel %vm421, %v499, 0.0
        %v522 = vadd.f32 %v520, %v521
        %v523 = vsel %vm421, %v503, 0.0
        %v524 = vadd.f32 %v522, %v523
        %v525 = vsel %vm421, %v507, 0.0
        %v526 = vadd.f32 %v524, %v525
        %v527 = vsel %vm421, %v477, 0.0
        %v528 = vsel %vm421, %v481, 0.0
        %v529 = vadd.f32 %v527, %v528
        %v530 = vsel %vm421, %v485, 0.0
        %v531 = vadd.f32 %v529, %v530
        %v532 = vsel %vm421, %v489, 0.0
        %v533 = vadd.f32 %v531, %v532
        %v534 = vsel %vm421, %v493, 0.0
        %v535 = vadd.f32 %v533, %v534
        %v536 = vsel %vm421, %v497, 0.0
        %v537 = vadd.f32 %v535, %v536
        %v538 = vsel %vm421, %v501, 0.0
        %v539 = vadd.f32 %v537, %v538
        %v540 = vsel %vm421, %v505, 0.0
        %v541 = vadd.f32 %v539, %v540
        %v542 = vsel %vm421, %v509, 0.0
        %v543 = vadd.f32 %v541, %v542
        %v544 = vrcp.pop %v526
        %v545 = vmul.f32 1.0, %v544
        %v546 = vrcp.pop %v543
        %v547 = vmul.f32 1.0, %v546
        %v548 = vmul.f32 %v397, %v545
        %v549 = vmul.f32 %v398, %v547
        %v550 = vld [vmem:[%s323] sm:$0xff]
        %v551 = vld [vmem:[%s323 + $0x8] sm:$0xff]
        %v552 = vld [vmem:[%s323 + $0x10] sm:$0xff]
        %v553 = vld [vmem:[%s323 + $0x18] sm:$0xff]
        %v554 = vld [vmem:[%s323 + $0x20] sm:$0xff]
        %v555 = vld [vmem:[%s323 + $0x28] sm:$0xff]
        %v556 = vld [vmem:[%s323 + $0x30] sm:$0xff]
        %v557 = vld [vmem:[%s323 + $0x38] sm:$0xff]
        %v558 = vld [vmem:[%s323 + $0x40] sm:$0xff]
        %v559 = vld [vmem:[%s323 + $0x48] sm:$0xff]
        %v560 = vld [vmem:[%s323 + $0x50] sm:$0xff]
        %v561 = vld [vmem:[%s323 + $0x58] sm:$0xff]
        %v562 = vld [vmem:[%s323 + $0x60] sm:$0xff]
        %v563 = vld [vmem:[%s323 + $0x68] sm:$0xff]
        %v564 = vld [vmem:[%s323 + $0x70] sm:$0xff]
        %v565 = vld [vmem:[%s323 + $0x78] sm:$0xff]
        %v566 = vld [vmem:[%s323 + $0x80] sm:$0xff]
        %v567 = vld [vmem:[%s323 + $0x88] sm:$0xff]
        %v568 = vsel %vm421, %v550, -inf
        %v569 = vsel %vm421, %v552, -inf
        %v570 = vsel %vm421, %v554, -inf
        %v571 = vmax.f32 %v568, %v570
        %v572 = vsel %vm421, %v556, -inf
        %v573 = vmax.f32 %v569, %v572
        %v574 = vsel %vm421, %v558, -inf
        %v575 = vmax.f32 %v571, %v574
        %v576 = vsel %vm421, %v560, -inf
        %v577 = vmax.f32 %v573, %v576
        %v578 = vsel %vm421, %v562, -inf
        %v579 = vmax.f32 %v575, %v578
        %v580 = vsel %vm421, %v564, -inf
        %v581 = vmax.f32 %v577, %v580
        %v582 = vsel %vm421, %v566, -inf
        %v583 = vmax.f32 %v579, %v582
        %v584 = vmax.f32 %v583, %v581
        %v585 = vsel %vm421, %v551, -inf
        %v586 = vsel %vm421, %v553, -inf
        %v587 = vsel %vm421, %v555, -inf
        %v588 = vmax.f32 %v585, %v587
        %v589 = vsel %vm421, %v557, -inf
        %v590 = vmax.f32 %v586, %v589
        %v591 = vsel %vm421, %v559, -inf
        %v592 = vmax.f32 %v588, %v591
        %v593 = vsel %vm421, %v561, -inf
        %v594 = vmax.f32 %v590, %v593
        %v595 = vsel %vm421, %v563, -inf
        %v596 = vmax.f32 %v592, %v595
        %v597 = vsel %vm421, %v565, -inf
        %v598 = vmax.f32 %v594, %v597
        %v599 = vsel %vm421, %v567, -inf
        %v600 = vmax.f32 %v596, %v599
        %v601 = vmax.f32 %v600, %v598
        %v602 = vsub.f32 %v550, %v584
        %v603 = vsub.f32 %v551, %v601
        %v604 = vsub.f32 %v552, %v584
        %v605 = vsub.f32 %v553, %v601
        %v606 = vsub.f32 %v554, %v584
        %v607 = vsub.f32 %v555, %v601
        %v608 = vsub.f32 %v556, %v584
        %v609 = vsub.f32 %v557, %v601
        %v610 = vsub.f32 %v558, %v584
        %v611 = vsub.f32 %v559, %v601
        %v612 = vsub.f32 %v560, %v584
        %v613 = vsub.f32 %v561, %v601
        %v614 = vsub.f32 %v562, %v584
        %v615 = vsub.f32 %v563, %v601
        %v616 = vsub.f32 %v564, %v584
        %v617 = vsub.f32 %v565, %v601
        %v618 = vsub.f32 %v566, %v584
        %v619 = vsub.f32 %v567, %v601
        %v620 = vmul.f32 %v602, 1.442695
        %v621 = vpow.pop %v620
        %v622 = vmul.f32 %v603, 1.442695
        %v623 = vpow.pop %v622
        %v624 = vmul.f32 %v604, 1.442695
        %v625 = vpow.pop %v624
        %v626 = vmul.f32 %v605, 1.442695
        %v627 = vpow.pop %v626
        %v628 = vmul.f32 %v606, 1.442695
        %v629 = vpow.pop %v628
        %v630 = vmul.f32 %v607, 1.442695
        %v631 = vpow.pop %v630
        %v632 = vmul.f32 %v608, 1.442695
        %v633 = vpow.pop %v632
        %v634 = vmul.f32 %v609, 1.442695
        %v635 = vpow.pop %v634
        %v636 = vmul.f32 %v610, 1.442695
        %v637 = vpow.pop %v636
        %v638 = vmul.f32 %v611, 1.442695
        %v639 = vpow.pop %v638
        %v640 = vmul.f32 %v612, 1.442695
        %v641 = vpow.pop %v640
        %v642 = vmul.f32 %v613, 1.442695
        %v643 = vpow.pop %v642
        %v644 = vmul.f32 %v614, 1.442695
        %v645 = vpow.pop %v644
        %v646 = vmul.f32 %v615, 1.442695
        %v647 = vpow.pop %v646
        %v648 = vmul.f32 %v616, 1.442695
        %v649 = vpow.pop %v648
        %v650 = vmul.f32 %v617, 1.442695
        %v651 = vpow.pop %v650
        %v652 = vmul.f32 %v618, 1.442695
        %v653 = vpow.pop %v652
        %v654 = vmul.f32 %v619, 1.442695
        %v655 = vpow.pop %v654
        %v656 = vsel %vm421, %v621, 0.0
        %v657 = vsel %vm421, %v625, 0.0
        %v658 = vadd.f32 %v656, %v657
        %v659 = vsel %vm421, %v629, 0.0
        %v660 = vadd.f32 %v658, %v659
        %v661 = vsel %vm421, %v633, 0.0
        %v662 = vadd.f32 %v660, %v661
        %v663 = vsel %vm421, %v637, 0.0
        %v664 = vadd.f32 %v662, %v663
        %v665 = vsel %vm421, %v641, 0.0
        %v666 = vadd.f32 %v664, %v665
        %v667 = vsel %vm421, %v645, 0.0
        %v668 = vadd.f32 %v666, %v667
        %v669 = vsel %vm421, %v649, 0.0
        %v670 = vadd.f32 %v668, %v669
        %v671 = vsel %vm421, %v653, 0.0
        %v672 = vadd.f32 %v670, %v671
        %v673 = vsel %vm421, %v623, 0.0
        %v674 = vsel %vm421, %v627, 0.0
        %v675 = vadd.f32 %v673, %v674
        %v676 = vsel %vm421, %v631, 0.0
        %v677 = vadd.f32 %v675, %v676
        %v678 = vsel %vm421, %v635, 0.0
        %v679 = vadd.f32 %v677, %v678
        %v680 = vsel %vm421, %v639, 0.0
        %v681 = vadd.f32 %v679, %v680
        %v682 = vsel %vm421, %v643, 0.0
        %v683 = vadd.f32 %v681, %v682
        %v684 = vsel %vm421, %v647, 0.0
        %v685 = vadd.f32 %v683, %v684
        %v686 = vsel %vm421, %v651, 0.0
        %v687 = vadd.f32 %v685, %v686
        %v688 = vsel %vm421, %v655, 0.0
        %v689 = vadd.f32 %v687, %v688
        %v690 = vrcp.pop %v672
        %v691 = vmul.f32 1.0, %v690
        %v692 = vrcp.pop %v689
        %v693 = vmul.f32 1.0, %v692
        %v694 = vmul.f32 %v399, %v691
        %v695 = vmul.f32 %v400, %v693
        %v696 = vld [vmem:[%s332] sm:$0xff]
        %v697 = vld [vmem:[%s332 + $0x8] sm:$0xff]
        %v698 = vld [vmem:[%s332 + $0x10] sm:$0xff]
        %v699 = vld [vmem:[%s332 + $0x18] sm:$0xff]
        %v700 = vld [vmem:[%s332 + $0x20] sm:$0xff]
        %v701 = vld [vmem:[%s332 + $0x28] sm:$0xff]
        %v702 = vld [vmem:[%s332 + $0x30] sm:$0xff]
        %v703 = vld [vmem:[%s332 + $0x38] sm:$0xff]
        %v704 = vld [vmem:[%s332 + $0x40] sm:$0xff]
        %v705 = vld [vmem:[%s332 + $0x48] sm:$0xff]
        %v706 = vld [vmem:[%s332 + $0x50] sm:$0xff]
        %v707 = vld [vmem:[%s332 + $0x58] sm:$0xff]
        %v708 = vld [vmem:[%s332 + $0x60] sm:$0xff]
        %v709 = vld [vmem:[%s332 + $0x68] sm:$0xff]
        %v710 = vld [vmem:[%s332 + $0x70] sm:$0xff]
        %v711 = vld [vmem:[%s332 + $0x78] sm:$0xff]
        %v712 = vld [vmem:[%s332 + $0x80] sm:$0xff]
        %v713 = vld [vmem:[%s332 + $0x88] sm:$0xff]
        %v714 = vsel %vm421, %v696, -inf
        %v715 = vsel %vm421, %v698, -inf
        %v716 = vsel %vm421, %v700, -inf
        %v717 = vmax.f32 %v714, %v716
        %v718 = vsel %vm421, %v702, -inf
        %v719 = vmax.f32 %v715, %v718
        %v720 = vsel %vm421, %v704, -inf
        %v721 = vmax.f32 %v717, %v720
        %v722 = vsel %vm421, %v706, -inf
        %v723 = vmax.f32 %v719, %v722
        %v724 = vsel %vm421, %v708, -inf
        %v725 = vmax.f32 %v721, %v724
        %v726 = vsel %vm421, %v710, -inf
        %v727 = vmax.f32 %v723, %v726
        %v728 = vsel %vm421, %v712, -inf
        %v729 = vmax.f32 %v725, %v728
        %v730 = vmax.f32 %v729, %v727
        %v731 = vsel %vm421, %v697, -inf
        %v732 = vsel %vm421, %v699, -inf
        %v733 = vsel %vm421, %v701, -inf
        %v734 = vmax.f32 %v731, %v733
        %v735 = vsel %vm421, %v703, -inf
        %v736 = vmax.f32 %v732, %v735
        %v737 = vsel %vm421, %v705, -inf
        %v738 = vmax.f32 %v734, %v737
        %v739 = vsel %vm421, %v707, -inf
        %v740 = vmax.f32 %v736, %v739
        %v741 = vsel %vm421, %v709, -inf
        %v742 = vmax.f32 %v738, %v741
        %v743 = vsel %vm421, %v711, -inf
        %v744 = vmax.f32 %v740, %v743
        %v745 = vsel %vm421, %v713, -inf
        %v746 = vmax.f32 %v742, %v745
        %v747 = vmax.f32 %v746, %v744
        %v748 = vsub.f32 %v696, %v730
        %v749 = vsub.f32 %v697, %v747
        %v750 = vsub.f32 %v698, %v730
        %v751 = vsub.f32 %v699, %v747
        %v752 = vsub.f32 %v700, %v730
        %v753 = vsub.f32 %v701, %v747
        %v754 = vsub.f32 %v702, %v730
        %v755 = vsub.f32 %v703, %v747
        %v756 = vsub.f32 %v704, %v730
        %v757 = vsub.f32 %v705, %v747
        %v758 = vsub.f32 %v706, %v730
        %v759 = vsub.f32 %v707, %v747
        %v760 = vsub.f32 %v708, %v730
        %v761 = vsub.f32 %v709, %v747
        %v762 = vsub.f32 %v710, %v730
        %v763 = vsub.f32 %v711, %v747
        %v764 = vsub.f32 %v712, %v730
        %v765 = vsub.f32 %v713, %v747
        %v766 = vmul.f32 %v748, 1.442695
        %v767 = vpow.pop %v766
        %v768 = vmul.f32 %v749, 1.442695
        %v769 = vpow.pop %v768
        %v770 = vmul.f32 %v750, 1.442695
        %v771 = vpow.pop %v770
        %v772 = vmul.f32 %v751, 1.442695
        %v773 = vpow.pop %v772
        %v774 = vmul.f32 %v752, 1.442695
        %v775 = vpow.pop %v774
        %v776 = vmul.f32 %v753, 1.442695
        %v777 = vpow.pop %v776
        %v778 = vmul.f32 %v754, 1.442695
        %v779 = vpow.pop %v778
        %v780 = vmul.f32 %v755, 1.442695
        %v781 = vpow.pop %v780
        %v782 = vmul.f32 %v756, 1.442695
        %v783 = vpow.pop %v782
        %v784 = vmul.f32 %v757, 1.442695
        %v785 = vpow.pop %v784
        %v786 = vmul.f32 %v758, 1.442695
        %v787 = vpow.pop %v786
        %v788 = vmul.f32 %v759, 1.442695
        %v789 = vpow.pop %v788
        %v790 = vmul.f32 %v760, 1.442695
        %v791 = vpow.pop %v790
        %v792 = vmul.f32 %v761, 1.442695
        %v793 = vpow.pop %v792
        %v794 = vmul.f32 %v762, 1.442695
        %v795 = vpow.pop %v794
        %v796 = vmul.f32 %v763, 1.442695
        %v797 = vpow.pop %v796
        %v798 = vmul.f32 %v764, 1.442695
        %v799 = vpow.pop %v798
        %v800 = vmul.f32 %v765, 1.442695
        %v801 = vpow.pop %v800
        %v802 = vsel %vm421, %v767, 0.0
        %v803 = vsel %vm421, %v771, 0.0
        %v804 = vadd.f32 %v802, %v803
        %v805 = vsel %vm421, %v775, 0.0
        %v806 = vadd.f32 %v804, %v805
        %v807 = vsel %vm421, %v779, 0.0
        %v808 = vadd.f32 %v806, %v807
        %v809 = vsel %vm421, %v783, 0.0
        %v810 = vadd.f32 %v808, %v809
        %v811 = vsel %vm421, %v787, 0.0
        %v812 = vadd.f32 %v810, %v811
        %v813 = vsel %vm421, %v791, 0.0
        %v814 = vadd.f32 %v812, %v813
        %v815 = vsel %vm421, %v795, 0.0
        %v816 = vadd.f32 %v814, %v815
        %v817 = vsel %vm421, %v799, 0.0
        %v818 = vadd.f32 %v816, %v817
        %v819 = vsel %vm421, %v769, 0.0
        %v820 = vsel %vm421, %v773, 0.0
        %v821 = vadd.f32 %v819, %v820
        %v822 = vsel %vm421, %v777, 0.0
        %v823 = vadd.f32 %v821, %v822
        %v824 = vsel %vm421, %v781, 0.0
        %v825 = vadd.f32 %v823, %v824
        %v826 = vsel %vm421, %v785, 0.0
        %v827 = vadd.f32 %v825, %v826
        %v828 = vsel %vm421, %v789, 0.0
        %v829 = vadd.f32 %v827, %v828
        %v830 = vsel %vm421, %v793, 0.0
        %v831 = vadd.f32 %v829, %v830
        %v832 = vsel %vm421, %v797, 0.0
        %v833 = vadd.f32 %v831, %v832
        %v834 = vsel %vm421, %v801, 0.0
        %v835 = vadd.f32 %v833, %v834
        %v836 = vrcp.pop %v818
        %v837 = vmul.f32 1.0, %v836
        %v838 = vrcp.pop %v835
        %v839 = vmul.f32 1.0, %v838
        %v840 = vmul.f32 %v401, %v837
        %v841 = vmul.f32 %v402, %v839
        %v842 = vmul.f32 %v475, %v548
        %v843 = vmul.f32 %v477, %v549
        %v844 = vmul.f32 %v479, %v548
        %v845 = vmul.f32 %v481, %v549
        %v846 = vmul.f32 %v483, %v548
        %v847 = vmul.f32 %v485, %v549
        %v848 = vmul.f32 %v487, %v548
        %v849 = vmul.f32 %v489, %v549
        %v850 = vmul.f32 %v491, %v548
        %v851 = vmul.f32 %v493, %v549
        %v852 = vmul.f32 %v495, %v548
        %v853 = vmul.f32 %v497, %v549
        %v854 = vmul.f32 %v499, %v548
        %v855 = vmul.f32 %v501, %v549
        %v856 = vmul.f32 %v503, %v548
        %v857 = vmul.f32 %v505, %v549
        %v858 = vmul.f32 %v507, %v548
        %v859 = vmul.f32 %v509, %v549
        %v860 = vmul.f32 %v621, %v694
        %v861 = vmul.f32 %v623, %v695
        %v862 = vmul.f32 %v625, %v694
        %v863 = vmul.f32 %v627, %v695
        %v864 = vmul.f32 %v629, %v694
        %v865 = vmul.f32 %v631, %v695
        %v866 = vmul.f32 %v633, %v694
        %v867 = vmul.f32 %v635, %v695
        %v868 = vmul.f32 %v637, %v694
        %v869 = vmul.f32 %v639, %v695
        %v870 = vadd.f32 %v850, %v868
        %v871 = vadd.f32 %v851, %v869
        %v872 = vmul.f32 %v641, %v694
        %v873 = vmul.f32 %v643, %v695
        %v874 = vmul.f32 %v645, %v694
        %v875 = vmul.f32 %v647, %v695
        %v876 = vmul.f32 %v649, %v694
        %v877 = vmul.f32 %v651, %v695
        %v878 = vmul.f32 %v653, %v694
        %v879 = vmul.f32 %v655, %v695
        %v880 = vmul.f32 %v767, %v840
        %v881 = vmul.f32 %v769, %v841
        %v882 = vmul.f32 %v771, %v840
        %v883 = vmul.f32 %v773, %v841
        %v884 = vmul.f32 %v775, %v840
        %v885 = vmul.f32 %v777, %v841
        %v886 = vmul.f32 %v779, %v840
        %v887 = vmul.f32 %v781, %v841
        %v888 = vmul.f32 %v783, %v840
        %v889 = vmul.f32 %v785, %v841
        %v890 = vadd.f32 %v870, %v888
        %v891 = vadd.f32 %v871, %v889
        %v892 = vmul.f32 %v787, %v840
        %v893 = vmul.f32 %v789, %v841
        %v894 = vmul.f32 %v791, %v840
        %v895 = vmul.f32 %v793, %v841
        %v896 = vmul.f32 %v795, %v840
        %v897 = vmul.f32 %v797, %v841
        %v898 = vmul.f32 %v799, %v840
        %v899 = vmul.f32 %v801, %v841
        %v900 = vld [vmem:[%s350] sm:$0xff]
        %v901 = vld [vmem:[%s350 + $0x8] sm:$0xff]
        %902 = vst [vmem:[#allocation2] sm:$0xff] 0.0
        %903 = vst [vmem:[#allocation2 + $0x8] sm:$0xff] 0.0
        %904 = vst [vmem:[#allocation2 + $0x10] sm:$0xff] 0.0
        %905 = vst [vmem:[#allocation2 + $0x18] sm:$0xff] 0.0
        %906 = vst [vmem:[#allocation2 + $0x20] sm:$0xff] 0.0
        %907 = vst [vmem:[#allocation2 + $0x28] sm:$0xff] 0.0
        %908 = vst [vmem:[#allocation2 + $0x30] sm:$0xff] 0.0
        %909 = vst [vmem:[#allocation2 + $0x38] sm:$0xff] 0.0
        %910 = vst.msk [vmem:[#allocation2 + $0x18] sm:$0xff] %vm421, %v900
        %911 = vst.msk [vmem:[#allocation2 + $0x28] sm:$0xff] %vm421, %v901
        %v912 = vld [vmem:[#allocation2 + $0x8] sm:$0xff]
        %v913 = vld [vmem:[#allocation2 + $0x18] sm:$0xff]
        %v914 = vld [vmem:[#allocation2 + $0x28] sm:$0xff]
        %v915 = vld [vmem:[#allocation2 + $0x38] sm:$0xff]
        %vm919 = vcmask 1042432
        %v920 = vrot.slane %v912, 5
        %v921 = vrot.slane %v913, 5
        %v922 = vsel %vm919, %v920, %v921
        %v923 = vrot.slane %v914, 5
        %v924 = vsel %vm919, %v921, %v923
        %v927 = vmul.f32 %v882, %v922
        %v928 = vmul.f32 %v883, %v924
        %vm929 = vcmask 1041408
        %v930 = vrot.slane %v912, 6
        %v931 = vrot.slane %v913, 6
        %v932 = vsel %vm929, %v930, %v931
        %v933 = vrot.slane %v914, 6
        %v934 = vsel %vm929, %v931, %v933
        %v937 = vmul.f32 %v862, %v932
        %v938 = vmul.f32 %v863, %v934
        %v939 = vadd.f32 %v927, %v937
        %v940 = vadd.f32 %v928, %v938
        %vm941 = vcmask 1040384
        %v942 = vrot.slane %v912, 7
        %v943 = vrot.slane %v913, 7
        %v944 = vsel %vm941, %v942, %v943
        %v945 = vrot.slane %v914, 7
        %v946 = vsel %vm941, %v943, %v945
        %v949 = vmul.f32 %v844, %v944
        %v950 = vmul.f32 %v845, %v946
        %v951 = vadd.f32 %v939, %v949
        %v952 = vadd.f32 %v940, %v950
        %v953 = vmul.f32 %v890, %v913
        %v954 = vmul.f32 %v891, %v914
        %v955 = vadd.f32 %v951, %v953
        %v956 = vadd.f32 %v952, %v954
        %vm958 = vcmask 1046528
        %v959 = vrot.slane %v913, 1
        %v960 = vrot.slane %v914, 1
        %v961 = vsel %vm958, %v959, %v960
        %v962 = vrot.slane %v915, 1
        %v963 = vsel %vm958, %v960, %v962
        %v966 = vmul.f32 %v856, %v961
        %v967 = vmul.f32 %v857, %v963
        %v968 = vadd.f32 %v955, %v966
        %v969 = vadd.f32 %v956, %v967
        %vm970 = vcmask 1045504
        %v971 = vrot.slane %v913, 2
        %v972 = vrot.slane %v914, 2
        %v973 = vsel %vm970, %v971, %v972
        %v974 = vrot.slane %v915, 2
        %v975 = vsel %vm970, %v972, %v974
        %v978 = vmul.f32 %v876, %v973
        %v979 = vmul.f32 %v877, %v975
        %v980 = vadd.f32 %v968, %v978
        %v981 = vadd.f32 %v969, %v979
        %vm982 = vcmask 1044480
        %v983 = vrot.slane %v913, 3
        %v984 = vrot.slane %v914, 3
        %v985 = vsel %vm982, %v983, %v984
        %v986 = vrot.slane %v915, 3
        %v987 = vsel %vm982, %v984, %v986
        %v990 = vmul.f32 %v896, %v985
        %v991 = vmul.f32 %v897, %v987
        %v992 = vadd.f32 %v980, %v990
        %v993 = vadd.f32 %v981, %v991
        %v994 = vld [vmem:[#allocation2] sm:$0xff]
        %v995 = vld [vmem:[#allocation2 + $0x10] sm:$0xff]
        %v996 = vld [vmem:[#allocation2 + $0x20] sm:$0xff]
        %v997 = vld [vmem:[#allocation2 + $0x30] sm:$0xff]
        %v1001 = vrot.slane %v994, 7
        %v1002 = vrot.slane %v995, 7
        %v1003 = vsel %vm941, %v1001, %v1002
        %v1004 = vrot.slane %v996, 7
        %v1005 = vsel %vm941, %v1002, %v1004
        %1006 = vrot.lane.b32.xlu0 %v1003, 1
        %v1007 = vpop.permute.xlu0 %1006
        %1008 = vrot.lane.b32.xlu0 %v944, 1
        %v1009 = vpop.permute.xlu0 %1008
        %1010 = vrot.lane.b32.xlu0 %v1005, 1
        %v1011 = vpop.permute.xlu0 %1010
        %1012 = vrot.lane.b32.xlu0 %v946, 1
        %v1013 = vpop.permute.xlu0 %1012
        %vm1014 = vcmask 7168
        %v1015 = vsel %vm1014, %v1007, %v1009
        %v1016 = vsel %vm1014, %v1011, %v1013
        %v1019 = vmul.f32 %v842, %v1015
        %v1020 = vmul.f32 %v843, %v1016
        %v1021 = vadd.f32 %v992, %v1019
        %v1022 = vadd.f32 %v993, %v1020
        %1023 = vrot.lane.b32.xlu0 %v995, 1
        %v1024 = vpop.permute.xlu0 %1023
        %1025 = vrot.lane.b32.xlu0 %v913, 1
        %v1026 = vpop.permute.xlu0 %1025
        %1027 = vrot.lane.b32.xlu0 %v996, 1
        %v1028 = vpop.permute.xlu0 %1027
        %1029 = vrot.lane.b32.xlu0 %v914, 1
        %v1030 = vpop.permute.xlu0 %1029
        %v1031 = vsel %vm1014, %v1024, %v1026
        %v1032 = vsel %vm1014, %v1028, %v1030
        %v1035 = vmul.f32 %v848, %v1031
        %v1036 = vmul.f32 %v849, %v1032
        %v1037 = vadd.f32 %v1021, %v1035
        %v1038 = vadd.f32 %v1022, %v1036
        %v1040 = vrot.slane %v995, 1
        %v1041 = vrot.slane %v996, 1
        %v1042 = vsel %vm958, %v1040, %v1041
        %v1043 = vrot.slane %v997, 1
        %v1044 = vsel %vm958, %v1041, %v1043
        %1045 = vrot.lane.b32.xlu0 %v1042, 1
        %v1046 = vpop.permute.xlu0 %1045
        %1047 = vrot.lane.b32.xlu0 %v961, 1
        %v1048 = vpop.permute.xlu0 %1047
        %1049 = vrot.lane.b32.xlu0 %v1044, 1
        %v1050 = vpop.permute.xlu0 %1049
        %1051 = vrot.lane.b32.xlu0 %v963, 1
        %v1052 = vpop.permute.xlu0 %1051
        %v1053 = vsel %vm1014, %v1046, %v1048
        %v1054 = vsel %vm1014, %v1050, %v1052
        %v1057 = vmul.f32 %v854, %v1053
        %v1058 = vmul.f32 %v855, %v1054
        %v1059 = vadd.f32 %v1037, %v1057
        %v1060 = vadd.f32 %v1038, %v1058
        %1061 = vrot.lane.b32.xlu0 %v944, 127
        %v1062 = vpop.permute.xlu0 %1061
        %1063 = vrot.lane.b32.xlu0 %v946, 127
        %v1064 = vpop.permute.xlu0 %1063
        %v1067 = vmul.f32 %v846, %v1062
        %v1068 = vmul.f32 %v847, %v1064
        %v1069 = vadd.f32 %v1059, %v1067
        %v1070 = vadd.f32 %v1060, %v1068
        %1071 = vrot.lane.b32.xlu0 %v913, 127
        %v1072 = vpop.permute.xlu0 %1071
        %1073 = vrot.lane.b32.xlu0 %v914, 127
        %v1074 = vpop.permute.xlu0 %1073
        %v1077 = vmul.f32 %v852, %v1072
        %v1078 = vmul.f32 %v853, %v1074
        %v1079 = vadd.f32 %v1069, %v1077
        %v1080 = vadd.f32 %v1070, %v1078
        %1081 = vrot.lane.b32.xlu0 %v961, 127
        %v1082 = vpop.permute.xlu0 %1081
        %1083 = vrot.lane.b32.xlu0 %v963, 127
        %v1084 = vpop.permute.xlu0 %1083
        %v1087 = vmul.f32 %v858, %v1082
        %v1088 = vmul.f32 %v859, %v1084
        %v1089 = vadd.f32 %v1079, %v1087
        %v1090 = vadd.f32 %v1080, %v1088
        %v1091 = vrot.slane %v994, 6
        %v1092 = vrot.slane %v995, 6
        %v1093 = vsel %vm929, %v1091, %v1092
        %v1094 = vrot.slane %v996, 6
        %v1095 = vsel %vm929, %v1092, %v1094
        %1096 = vrot.lane.b32.xlu0 %v1093, 2
        %v1097 = vpop.permute.xlu0 %1096
        %1098 = vrot.lane.b32.xlu0 %v932, 2
        %v1099 = vpop.permute.xlu0 %1098
        %1100 = vrot.lane.b32.xlu0 %v1095, 2
        %v1101 = vpop.permute.xlu0 %1100
        %1102 = vrot.lane.b32.xlu0 %v934, 2
        %v1103 = vpop.permute.xlu0 %1102
        %vm1104 = vcmask 15360
        %v1105 = vsel %vm1104, %v1097, %v1099
        %v1106 = vsel %vm1104, %v1101, %v1103
        %v1109 = vmul.f32 %v860, %v1105
        %v1110 = vmul.f32 %v861, %v1106
        %v1111 = vadd.f32 %v1089, %v1109
        %v1112 = vadd.f32 %v1090, %v1110
        %1113 = vrot.lane.b32.xlu0 %v995, 2
        %v1114 = vpop.permute.xlu0 %1113
        %1115 = vrot.lane.b32.xlu0 %v913, 2
        %v1116 = vpop.permute.xlu0 %1115
        %1117 = vrot.lane.b32.xlu0 %v996, 2
        %v1118 = vpop.permute.xlu0 %1117
        %1119 = vrot.lane.b32.xlu0 %v914, 2
        %v1120 = vpop.permute.xlu0 %1119
        %v1121 = vsel %vm1104, %v1114, %v1116
        %v1122 = vsel %vm1104, %v1118, %v1120
        %v1125 = vmul.f32 %v866, %v1121
        %v1126 = vmul.f32 %v867, %v1122
        %v1127 = vadd.f32 %v1111, %v1125
        %v1128 = vadd.f32 %v1112, %v1126
        %v1129 = vrot.slane %v995, 2
        %v1130 = vrot.slane %v996, 2
        %v1131 = vsel %vm970, %v1129, %v1130
        %v1132 = vrot.slane %v997, 2
        %v1133 = vsel %vm970, %v1130, %v1132
        %1134 = vrot.lane.b32.xlu0 %v1131, 2
        %v1135 = vpop.permute.xlu0 %1134
        %1136 = vrot.lane.b32.xlu0 %v973, 2
        %v1137 = vpop.permute.xlu0 %1136
        %1138 = vrot.lane.b32.xlu0 %v1133, 2
        %v1139 = vpop.permute.xlu0 %1138
        %1140 = vrot.lane.b32.xlu0 %v975, 2
        %v1141 = vpop.permute.xlu0 %1140
        %v1142 = vsel %vm1104, %v1135, %v1137
        %v1143 = vsel %vm1104, %v1139, %v1141
        %v1146 = vmul.f32 %v874, %v1142
        %v1147 = vmul.f32 %v875, %v1143
        %v1148 = vadd.f32 %v1127, %v1146
        %v1149 = vadd.f32 %v1128, %v1147
        %1150 = vrot.lane.b32.xlu0 %v932, 126
        %v1151 = vpop.permute.xlu0 %1150
        %1152 = vrot.lane.b32.xlu0 %v934, 126
        %v1153 = vpop.permute.xlu0 %1152
        %v1156 = vmul.f32 %v864, %v1151
        %v1157 = vmul.f32 %v865, %v1153
        %v1158 = vadd.f32 %v1148, %v1156
        %v1159 = vadd.f32 %v1149, %v1157
        %1160 = vrot.lane.b32.xlu0 %v913, 126
        %v1161 = vpop.permute.xlu0 %1160
        %1162 = vrot.lane.b32.xlu0 %v914, 126
        %v1163 = vpop.permute.xlu0 %1162
        %v1166 = vmul.f32 %v872, %v1161
        %v1167 = vmul.f32 %v873, %v1163
        %v1168 = vadd.f32 %v1158, %v1166
        %v1169 = vadd.f32 %v1159, %v1167
        %1170 = vrot.lane.b32.xlu0 %v973, 126
        %v1171 = vpop.permute.xlu0 %1170
        %1172 = vrot.lane.b32.xlu0 %v975, 126
        %v1173 = vpop.permute.xlu0 %1172
        %v1176 = vmul.f32 %v878, %v1171
        %v1177 = vmul.f32 %v879, %v1173
        %v1178 = vadd.f32 %v1168, %v1176
        %v1179 = vadd.f32 %v1169, %v1177
        %v1180 = vrot.slane %v994, 5
        %v1181 = vrot.slane %v995, 5
        %v1182 = vsel %vm919, %v1180, %v1181
        %v1183 = vrot.slane %v996, 5
        %v1184 = vsel %vm919, %v1181, %v1183
        %1185 = vrot.lane.b32.xlu0 %v1182, 3
        %v1186 = vpop.permute.xlu0 %1185
        %1187 = vrot.lane.b32.xlu0 %v922, 3
        %v1188 = vpop.permute.xlu0 %1187
        %1189 = vrot.lane.b32.xlu0 %v1184, 3
        %v1190 = vpop.permute.xlu0 %1189
        %1191 = vrot.lane.b32.xlu0 %v924, 3
        %v1192 = vpop.permute.xlu0 %1191
        %vm1193 = vcmask 23552
        %v1194 = vsel %vm1193, %v1186, %v1188
        %v1195 = vsel %vm1193, %v1190, %v1192
        %v1198 = vmul.f32 %v880, %v1194
        %v1199 = vmul.f32 %v881, %v1195
        %v1200 = vadd.f32 %v1178, %v1198
        %v1201 = vadd.f32 %v1179, %v1199
        %1202 = vrot.lane.b32.xlu0 %v995, 3
        %v1203 = vpop.permute.xlu0 %1202
        %1204 = vrot.lane.b32.xlu0 %v913, 3
        %v1205 = vpop.permute.xlu0 %1204
        %1206 = vrot.lane.b32.xlu0 %v996, 3
        %v1207 = vpop.permute.xlu0 %1206
        %1208 = vrot.lane.b32.xlu0 %v914, 3
        %v1209 = vpop.permute.xlu0 %1208
        %v1210 = vsel %vm1193, %v1203, %v1205
        %v1211 = vsel %vm1193, %v1207, %v1209
        %v1214 = vmul.f32 %v886, %v1210
        %v1215 = vmul.f32 %v887, %v1211
        %v1216 = vadd.f32 %v1200, %v1214
        %v1217 = vadd.f32 %v1201, %v1215
        %v1218 = vrot.slane %v995, 3
        %v1219 = vrot.slane %v996, 3
        %v1220 = vsel %vm982, %v1218, %v1219
        %v1221 = vrot.slane %v997, 3
        %v1222 = vsel %vm982, %v1219, %v1221
        %1223 = vrot.lane.b32.xlu0 %v1220, 3
        %v1224 = vpop.permute.xlu0 %1223
        %1225 = vrot.lane.b32.xlu0 %v985, 3
        %v1226 = vpop.permute.xlu0 %1225
        %1227 = vrot.lane.b32.xlu0 %v1222, 3
        %v1228 = vpop.permute.xlu0 %1227
        %1229 = vrot.lane.b32.xlu0 %v987, 3
        %v1230 = vpop.permute.xlu0 %1229
        %v1231 = vsel %vm1193, %v1224, %v1226
        %v1232 = vsel %vm1193, %v1228, %v1230
        %v1235 = vmul.f32 %v894, %v1231
        %v1236 = vmul.f32 %v895, %v1232
        %v1237 = vadd.f32 %v1216, %v1235
        %v1238 = vadd.f32 %v1217, %v1236
        %1239 = vrot.lane.b32.xlu0 %v922, 125
        %v1240 = vpop.permute.xlu0 %1239
        %1241 = vrot.lane.b32.xlu0 %v924, 125
        %v1242 = vpop.permute.xlu0 %1241
        %v1245 = vmul.f32 %v884, %v1240
        %v1246 = vmul.f32 %v885, %v1242
        %v1247 = vadd.f32 %v1237, %v1245
        %v1248 = vadd.f32 %v1238, %v1246
        %1249 = vrot.lane.b32.xlu0 %v913, 125
        %v1250 = vpop.permute.xlu0 %1249
        %1251 = vrot.lane.b32.xlu0 %v914, 125
        %v1252 = vpop.permute.xlu0 %1251
        %v1255 = vmul.f32 %v892, %v1250
        %v1256 = vmul.f32 %v893, %v1252
        %v1257 = vadd.f32 %v1247, %v1255
        %v1258 = vadd.f32 %v1248, %v1256
        %1259 = vrot.lane.b32.xlu0 %v985, 125
        %v1260 = vpop.permute.xlu0 %1259
        %1261 = vrot.lane.b32.xlu0 %v987, 125
        %v1262 = vpop.permute.xlu0 %1261
        %v1265 = vmul.f32 %v898, %v1260
        %v1266 = vmul.f32 %v899, %v1262
        %v1267 = vadd.f32 %v1257, %v1265
        %v1268 = vadd.f32 %v1258, %v1266
        %1269 = vst.msk [vmem:[#allocation2 + $0x18] sm:$0xff] %vm421, %v1267
        %1270 = vst.msk [vmem:[#allocation2 + $0x28] sm:$0xff] %vm421, %v1268
        %v1271 = vld [vmem:[#allocation2 + $0x8] sm:$0xff]
        %v1272 = vld [vmem:[#allocation2 + $0x18] sm:$0xff]
        %v1273 = vld [vmem:[#allocation2 + $0x28] sm:$0xff]
        %v1274 = vld [vmem:[#allocation2 + $0x38] sm:$0xff]
        %v1278 = vrot.slane %v1271, 5
        %v1279 = vrot.slane %v1272, 5
        %v1280 = vsel %vm919, %v1278, %v1279
        %v1281 = vrot.slane %v1273, 5
        %v1282 = vsel %vm919, %v1279, %v1281
        %v1285 = vmul.f32 %v882, %v1280
        %v1286 = vmul.f32 %v883, %v1282
        %v1287 = vrot.slane %v1271, 6
        %v1288 = vrot.slane %v1272, 6
        %v1289 = vsel %vm929, %v1287, %v1288
        %v1290 = vrot.slane %v1273, 6
        %v1291 = vsel %vm929, %v1288, %v1290
        %v1294 = vmul.f32 %v862, %v1289
        %v1295 = vmul.f32 %v863, %v1291
        %v1296 = vadd.f32 %v1285, %v1294
        %v1297 = vadd.f32 %v1286, %v1295
        %v1298 = vrot.slane %v1271, 7
        %v1299 = vrot.slane %v1272, 7
        %v1300 = vsel %vm941, %v1298, %v1299
        %v1301 = vrot.slane %v1273, 7
        %v1302 = vsel %vm941, %v1299, %v1301
        %v1305 = vmul.f32 %v844, %v1300
        %v1306 = vmul.f32 %v845, %v1302
        %v1307 = vadd.f32 %v1296, %v1305
        %v1308 = vadd.f32 %v1297, %v1306
        %v1309 = vmul.f32 %v890, %v1272
        %v1310 = vmul.f32 %v891, %v1273
        %v1311 = vadd.f32 %v1307, %v1309
        %v1312 = vadd.f32 %v1308, %v1310
        %v1314 = vrot.slane %v1272, 1
        %v1315 = vrot.slane %v1273, 1
        %v1316 = vsel %vm958, %v1314, %v1315
        %v1317 = vrot.slane %v1274, 1
        %v1318 = vsel %vm958, %v1315, %v1317
        %v1321 = vmul.f32 %v856, %v1316
        %v1322 = vmul.f32 %v857, %v1318
        %v1323 = vadd.f32 %v1311, %v1321
        %v1324 = vadd.f32 %v1312, %v1322
        %v1325 = vrot.slane %v1272, 2
        %v1326 = vrot.slane %v1273, 2
        %v1327 = vsel %vm970, %v1325, %v1326
        %v1328 = vrot.slane %v1274, 2
        %v1329 = vsel %vm970, %v1326, %v1328
        %v1332 = vmul.f32 %v876, %v1327
        %v1333 = vmul.f32 %v877, %v1329
        %v1334 = vadd.f32 %v1323, %v1332
        %v1335 = vadd.f32 %v1324, %v1333
        %v1336 = vrot.slane %v1272, 3
        %v1337 = vrot.slane %v1273, 3
        %v1338 = vsel %vm982, %v1336, %v1337
        %v1339 = vrot.slane %v1274, 3
        %v1340 = vsel %vm982, %v1337, %v1339
        %v1343 = vmul.f32 %v896, %v1338
        %v1344 = vmul.f32 %v897, %v1340
        %v1345 = vadd.f32 %v1334, %v1343
        %v1346 = vadd.f32 %v1335, %v1344
        %v1347 = vld [vmem:[#allocation2] sm:$0xff]
        %v1348 = vld [vmem:[#allocation2 + $0x10] sm:$0xff]
        %v1349 = vld [vmem:[#allocation2 + $0x20] sm:$0xff]
        %v1350 = vld [vmem:[#allocation2 + $0x30] sm:$0xff]
        %v1354 = vrot.slane %v1347, 7
        %v1355 = vrot.slane %v1348, 7
        %v1356 = vsel %vm941, %v1354, %v1355
        %v1357 = vrot.slane %v1349, 7
        %v1358 = vsel %vm941, %v1355, %v1357
        %1359 = vrot.lane.b32.xlu0 %v1356, 1
        %v1360 = vpop.permute.xlu0 %1359
        %1361 = vrot.lane.b32.xlu0 %v1300, 1
        %v1362 = vpop.permute.xlu0 %1361
        %1363 = vrot.lane.b32.xlu0 %v1358, 1
        %v1364 = vpop.permute.xlu0 %1363
        %1365 = vrot.lane.b32.xlu0 %v1302, 1
        %v1366 = vpop.permute.xlu0 %1365
        %v1367 = vsel %vm1014, %v1360, %v1362
        %v1368 = vsel %vm1014, %v1364, %v1366
        %v1371 = vmul.f32 %v842, %v1367
        %v1372 = vmul.f32 %v843, %v1368
        %v1373 = vadd.f32 %v1345, %v1371
        %v1374 = vadd.f32 %v1346, %v1372
        %1375 = vrot.lane.b32.xlu0 %v1348, 1
        %v1376 = vpop.permute.xlu0 %1375
        %1377 = vrot.lane.b32.xlu0 %v1272, 1
        %v1378 = vpop.permute.xlu0 %1377
        %1379 = vrot.lane.b32.xlu0 %v1349, 1
        %v1380 = vpop.permute.xlu0 %1379
        %1381 = vrot.lane.b32.xlu0 %v1273, 1
        %v1382 = vpop.permute.xlu0 %1381
        %v1383 = vsel %vm1014, %v1376, %v1378
        %v1384 = vsel %vm1014, %v1380, %v1382
        %v1387 = vmul.f32 %v848, %v1383
        %v1388 = vmul.f32 %v849, %v1384
        %v1389 = vadd.f32 %v1373, %v1387
        %v1390 = vadd.f32 %v1374, %v1388
        %v1392 = vrot.slane %v1348, 1
        %v1393 = vrot.slane %v1349, 1
        %v1394 = vsel %vm958, %v1392, %v1393
        %v1395 = vrot.slane %v1350, 1
        %v1396 = vsel %vm958, %v1393, %v1395
        %1397 = vrot.lane.b32.xlu0 %v1394, 1
        %v1398 = vpop.permute.xlu0 %1397
        %1399 = vrot.lane.b32.xlu0 %v1316, 1
        %v1400 = vpop.permute.xlu0 %1399
        %1401 = vrot.lane.b32.xlu0 %v1396, 1
        %v1402 = vpop.permute.xlu0 %1401
        %1403 = vrot.lane.b32.xlu0 %v1318, 1
        %v1404 = vpop.permute.xlu0 %1403
        %v1405 = vsel %vm1014, %v1398, %v1400
        %v1406 = vsel %vm1014, %v1402, %v1404
        %v1409 = vmul.f32 %v854, %v1405
        %v1410 = vmul.f32 %v855, %v1406
        %v1411 = vadd.f32 %v1389, %v1409
        %v1412 = vadd.f32 %v1390, %v1410
        %1413 = vrot.lane.b32.xlu0 %v1300, 127
        %v1414 = vpop.permute.xlu0 %1413
        %1415 = vrot.lane.b32.xlu0 %v1302, 127
        %v1416 = vpop.permute.xlu0 %1415
        %v1419 = vmul.f32 %v846, %v1414
        %v1420 = vmul.f32 %v847, %v1416
        %v1421 = vadd.f32 %v1411, %v1419
        %v1422 = vadd.f32 %v1412, %v1420
        %1423 = vrot.lane.b32.xlu0 %v1272, 127
        %v1424 = vpop.permute.xlu0 %1423
        %1425 = vrot.lane.b32.xlu0 %v1273, 127
        %v1426 = vpop.permute.xlu0 %1425
        %v1429 = vmul.f32 %v852, %v1424
        %v1430 = vmul.f32 %v853, %v1426
        %v1431 = vadd.f32 %v1421, %v1429
        %v1432 = vadd.f32 %v1422, %v1430
        %1433 = vrot.lane.b32.xlu0 %v1316, 127
        %v1434 = vpop.permute.xlu0 %1433
        %1435 = vrot.lane.b32.xlu0 %v1318, 127
        %v1436 = vpop.permute.xlu0 %1435
        %v1439 = vmul.f32 %v858, %v1434
        %v1440 = vmul.f32 %v859, %v1436
        %v1441 = vadd.f32 %v1431, %v1439
        %v1442 = vadd.f32 %v1432, %v1440
        %v1443 = vrot.slane %v1347, 6
        %v1444 = vrot.slane %v1348, 6
        %v1445 = vsel %vm929, %v1443, %v1444
        %v1446 = vrot.slane %v1349, 6
        %v1447 = vsel %vm929, %v1444, %v1446
        %1448 = vrot.lane.b32.xlu0 %v1445, 2
        %v1449 = vpop.permute.xlu0 %1448
        %1450 = vrot.lane.b32.xlu0 %v1289, 2
        %v1451 = vpop.permute.xlu0 %1450
        %1452 = vrot.lane.b32.xlu0 %v1447, 2
        %v1453 = vpop.permute.xlu0 %1452
        %1454 = vrot.lane.b32.xlu0 %v1291, 2
        %v1455 = vpop.permute.xlu0 %1454
        %v1456 = vsel %vm1104, %v1449, %v1451
        %v1457 = vsel %vm1104, %v1453, %v1455
        %v1460 = vmul.f32 %v860, %v1456
        %v1461 = vmul.f32 %v861, %v1457
        %v1462 = vadd.f32 %v1441, %v1460
        %v1463 = vadd.f32 %v1442, %v1461
        %1464 = vrot.lane.b32.xlu0 %v1348, 2
        %v1465 = vpop.permute.xlu0 %1464
        %1466 = vrot.lane.b32.xlu0 %v1272, 2
        %v1467 = vpop.permute.xlu0 %1466
        %1468 = vrot.lane.b32.xlu0 %v1349, 2
        %v1469 = vpop.permute.xlu0 %1468
        %1470 = vrot.lane.b32.xlu0 %v1273, 2
        %v1471 = vpop.permute.xlu0 %1470
        %v1472 = vsel %vm1104, %v1465, %v1467
        %v1473 = vsel %vm1104, %v1469, %v1471
        %v1476 = vmul.f32 %v866, %v1472
        %v1477 = vmul.f32 %v867, %v1473
        %v1478 = vadd.f32 %v1462, %v1476
        %v1479 = vadd.f32 %v1463, %v1477
        %v1480 = vrot.slane %v1348, 2
        %v1481 = vrot.slane %v1349, 2
        %v1482 = vsel %vm970, %v1480, %v1481
        %v1483 = vrot.slane %v1350, 2
        %v1484 = vsel %vm970, %v1481, %v1483
        %1485 = vrot.lane.b32.xlu0 %v1482, 2
        %v1486 = vpop.permute.xlu0 %1485
        %1487 = vrot.lane.b32.xlu0 %v1327, 2
        %v1488 = vpop.permute.xlu0 %1487
        %1489 = vrot.lane.b32.xlu0 %v1484, 2
        %v1490 = vpop.permute.xlu0 %1489
        %1491 = vrot.lane.b32.xlu0 %v1329, 2
        %v1492 = vpop.permute.xlu0 %1491
        %v1493 = vsel %vm1104, %v1486, %v1488
        %v1494 = vsel %vm1104, %v1490, %v1492
        %v1497 = vmul.f32 %v874, %v1493
        %v1498 = vmul.f32 %v875, %v1494
        %v1499 = vadd.f32 %v1478, %v1497
        %v1500 = vadd.f32 %v1479, %v1498
        %1501 = vrot.lane.b32.xlu0 %v1289, 126
        %v1502 = vpop.permute.xlu0 %1501
        %1503 = vrot.lane.b32.xlu0 %v1291, 126
        %v1504 = vpop.permute.xlu0 %1503
        %v1507 = vmul.f32 %v864, %v1502
        %v1508 = vmul.f32 %v865, %v1504
        %v1509 = vadd.f32 %v1499, %v1507
        %v1510 = vadd.f32 %v1500, %v1508
        %1511 = vrot.lane.b32.xlu0 %v1272, 126
        %v1512 = vpop.permute.xlu0 %1511
        %1513 = vrot.lane.b32.xlu0 %v1273, 126
        %v1514 = vpop.permute.xlu0 %1513
        %v1517 = vmul.f32 %v872, %v1512
        %v1518 = vmul.f32 %v873, %v1514
        %v1519 = vadd.f32 %v1509, %v1517
        %v1520 = vadd.f32 %v1510, %v1518
        %1521 = vrot.lane.b32.xlu0 %v1327, 126
        %v1522 = vpop.permute.xlu0 %1521
        %1523 = vrot.lane.b32.xlu0 %v1329, 126
        %v1524 = vpop.permute.xlu0 %1523
        %v1527 = vmul.f32 %v878, %v1522
        %v1528 = vmul.f32 %v879, %v1524
        %v1529 = vadd.f32 %v1519, %v1527
        %v1530 = vadd.f32 %v1520, %v1528
        %v1531 = vrot.slane %v1347, 5
        %v1532 = vrot.slane %v1348, 5
        %v1533 = vsel %vm919, %v1531, %v1532
        %v1534 = vrot.slane %v1349, 5
        %v1535 = vsel %vm919, %v1532, %v1534
        %1536 = vrot.lane.b32.xlu0 %v1533, 3
        %v1537 = vpop.permute.xlu0 %1536
        %1538 = vrot.lane.b32.xlu0 %v1280, 3
        %v1539 = vpop.permute.xlu0 %1538
        %1540 = vrot.lane.b32.xlu0 %v1535, 3
        %v1541 = vpop.permute.xlu0 %1540
        %1542 = vrot.lane.b32.xlu0 %v1282, 3
        %v1543 = vpop.permute.xlu0 %1542
        %v1544 = vsel %vm1193, %v1537, %v1539
        %v1545 = vsel %vm1193, %v1541, %v1543
        %v1548 = vmul.f32 %v880, %v1544
        %v1549 = vmul.f32 %v881, %v1545
        %v1550 = vadd.f32 %v1529, %v1548
        %v1551 = vadd.f32 %v1530, %v1549
        %1552 = vrot.lane.b32.xlu0 %v1348, 3
        %v1553 = vpop.permute.xlu0 %1552
        %1554 = vrot.lane.b32.xlu0 %v1272, 3
        %v1555 = vpop.permute.xlu0 %1554
        %1556 = vrot.lane.b32.xlu0 %v1349, 3
        %v1557 = vpop.permute.xlu0 %1556
        %1558 = vrot.lane.b32.xlu0 %v1273, 3
        %v1559 = vpop.permute.xlu0 %1558
        %v1560 = vsel %vm1193, %v1553, %v1555
        %v1561 = vsel %vm1193, %v1557, %v1559
        %v1564 = vmul.f32 %v886, %v1560
        %v1565 = vmul.f32 %v887, %v1561
        %v1566 = vadd.f32 %v1550, %v1564
        %v1567 = vadd.f32 %v1551, %v1565
        %v1568 = vrot.slane %v1348, 3
        %v1569 = vrot.slane %v1349, 3
        %v1570 = vsel %vm982, %v1568, %v1569
        %v1571 = vrot.slane %v1350, 3
        %v1572 = vsel %vm982, %v1569, %v1571
        %1573 = vrot.lane.b32.xlu0 %v1570, 3
        %v1574 = vpop.permute.xlu0 %1573
        %1575 = vrot.lane.b32.xlu0 %v1338, 3
        %v1576 = vpop.permute.xlu0 %1575
        %1577 = vrot.lane.b32.xlu0 %v1572, 3
        %v1578 = vpop.permute.xlu0 %1577
        %1579 = vrot.lane.b32.xlu0 %v1340, 3
        %v1580 = vpop.permute.xlu0 %1579
        %v1581 = vsel %vm1193, %v1574, %v1576
        %v1582 = vsel %vm1193, %v1578, %v1580
        %v1585 = vmul.f32 %v894, %v1581
        %v1586 = vmul.f32 %v895, %v1582
        %v1587 = vadd.f32 %v1566, %v1585
        %v1588 = vadd.f32 %v1567, %v1586
        %1589 = vrot.lane.b32.xlu0 %v1280, 125
        %v1590 = vpop.permute.xlu0 %1589
        %1591 = vrot.lane.b32.xlu0 %v1282, 125
        %v1592 = vpop.permute.xlu0 %1591
        %v1595 = vmul.f32 %v884, %v1590
        %v1596 = vmul.f32 %v885, %v1592
        %v1597 = vadd.f32 %v1587, %v1595
        %v1598 = vadd.f32 %v1588, %v1596
        %1599 = vrot.lane.b32.xlu0 %v1272, 125
        %v1600 = vpop.permute.xlu0 %1599
        %1601 = vrot.lane.b32.xlu0 %v1273, 125
        %v1602 = vpop.permute.xlu0 %1601
        %v1605 = vmul.f32 %v892, %v1600
        %v1606 = vmul.f32 %v893, %v1602
        %v1607 = vadd.f32 %v1597, %v1605
        %v1608 = vadd.f32 %v1598, %v1606
        %1609 = vrot.lane.b32.xlu0 %v1338, 125
        %v1610 = vpop.permute.xlu0 %1609
        %1611 = vrot.lane.b32.xlu0 %v1340, 125
        %v1612 = vpop.permute.xlu0 %1611
        %v1615 = vmul.f32 %v898, %v1610
        %v1616 = vmul.f32 %v899, %v1612
        %v1617 = vadd.f32 %v1607, %v1615
        %v1618 = vadd.f32 %v1608, %v1616
        %1619 = vst.msk [vmem:[%s396] sm:$0xff] %vm421, %v1617
        %1620 = vst.msk [vmem:[%s396 + $0x8] sm:$0xff] %vm421, %v1618
        %s1621 = sand.u32 %s166, 1
        %s1622 = scalar_lea.sflag [#allocation5], %s1621
        %s1623 = sand.u32 %s166, 1
        %s1624 = smul.addr %s1623, 16
        %s1625 = scalar_lea.vmem [#allocation12], %s1624
        // Predicated region
        $region61: #{tpu_custom_call.1} parent=39 // pred_check
          %p1626 = pneg %p176
        $region62: #{tpu_custom_call.1} parent=39 // pred_check_branch
          %1628 = sbr.rel (%p1626) target = $region64
        $region63: #{tpu_custom_call.1} parent=39 // pred_region
          %s1630 = ssub.s32 256, 256
          %1631 = vsyncadd %s1622, %s1630
          %s1632 = smul.addr %s28, 2
          %s1633 = smul.addr %s1632, 128
          %s1634 = scalar_lea.hbm %s5, %s1633
          %s1635 = sshll.u32 %s1625, 4
          %s1636 = int_to_ptr.vmem [resolvable:$true] %s1635
          %1641 = dma.vmem_to_hbm [thread:$0]  %s1636, 256, %s1634, %s1622, 128, 128, 8
        $region64: #{tpu_custom_call.1} parent=39 // pred_fallthru
          _
      $region40: #{tpu_custom_call.1} parent=5 // pred_fallthru
        _
      %p1642 = scmp.le.s32.totalorder 2, %s23
      // Predicated region
      $region65: #{tpu_custom_call.1} parent=5 // pred_check
        %p1643 = pneg %p1642
      $region66: #{tpu_custom_call.1} parent=5 // pred_check_branch
        %1645 = sbr.rel (%p1643) target = $region68
      $region67: #{tpu_custom_call.1} parent=5 // pred_region
        %s1646 = ssub.s32 %s23, 2
        // Predicated region
        $region69: #{tpu_custom_call.1} parent=67 // pred_check
          %p1647 = pneg %p182
        $region70: #{tpu_custom_call.1} parent=67 // pred_check_branch
          %1649 = sbr.rel (%p1647) target = $region72
        $region71: #{tpu_custom_call.1} parent=67 // pred_region
          %s1650 = sand.u32 %s167, 1
          %s1651 = scalar_lea.sflag [#allocation5], %s1650
          %s1652 = sand.u32 %s167, 1
          %s1653 = smul.addr %s1652, 16
          %s1654 = scalar_lea.vmem [#allocation12], %s1653
          %1655 = dma.done %s1651, 256
        $region72: #{tpu_custom_call.1} parent=67 // pred_fallthru
          _
      $region68: #{tpu_custom_call.1} parent=5 // pred_fallthru
        _
    $region6: #{tpu_custom_call.1} parent=1 // loop_footer
      %s27 = sadd.s32 1, %s23
    $region7: #{tpu_custom_call.1} parent=1 // loop_footer_branch
      %22 = sbr.rel target = $region3
    $region8: #{tpu_custom_call.1} parent=1 // loop_exit
      _
    %1656 = vsyncpa [#allocation4], 1
    %s1657 = scalar_lea.sflag [#allocation4], 1
    %1658 = vsyncpa %s1657, 1
    %1659 = vsyncpa [#allocation7], 1
    %s1660 = scalar_lea.sflag [#allocation7], 1
    %1661 = vsyncpa %s1660, 1
    %1662 = vsyncpa [#allocation10], 1
    %s1663 = scalar_lea.sflag [#allocation10], 1
    %1664 = vsyncpa %s1663, 1
    %1665 = vsyncpa [#allocation5], 1
    %s1666 = scalar_lea.sflag [#allocation5], 1
    %1667 = vsyncpa %s1666, 1

</llo_original>
